<compile_context>
chip_gen: v6e
topology: v6e:2x2x1
jax: 0.10.0
libtpu: 0.0.40
codegen_flags: <defaults>
</compile_context>

<pallas_src>
import math
import functools

import jax
import jax.numpy as jnp
from jax.experimental import pallas as pl
from jax.experimental.pallas import tpu as pltpu

D_MODEL = 32
NUM_HEADS = 2
SEQ_DEC = 8     # masked_decoder_output sequence length (query length)
SEQ_ENC = 16    # encoder_output sequence length (key/value length)
BATCH = 2


def _tensorcores_per_chip():
    """v7x has 2 TensorCores per chip; v5e/v6e have 1. Safe fallback: 1."""
    try:
        kind = jax.devices()[0].device_kind.lower()
    except Exception:
        return 1
    return 2 if "7" in kind else 1


def cross_attention_kernel(
    enc_ref, dec_ref, wqkv_ref, bqkv_ref, wo_ref, bo_ref,
    attn_ref, out_ref,
    *, num_heads, head_dim, block_b,
):
    scale = 1.0 / math.sqrt(head_dim)
    b_o = bo_ref[...]                # (1, D)
    d_model = wo_ref.shape[2]

    for b in range(block_b):         # static unroll over batch elements in this block
        enc = enc_ref[b]             # (S_enc, D)
        dec = dec_ref[b]             # (S_dec, D)
        s_dec = dec.shape[0]

        acc = jnp.zeros((s_dec, d_model), jnp.float32)
        for h in range(num_heads):   # static unroll over heads; no lane slicing/concat
            # Per-head projections via packed weight slabs (leading-axis index only).
            qh = jnp.dot(dec, wqkv_ref[h],
                         preferred_element_type=jnp.float32) + bqkv_ref[h]
            kh = jnp.dot(enc, wqkv_ref[num_heads + h],
                         preferred_element_type=jnp.float32) + bqkv_ref[num_heads + h]
            vh = jnp.dot(enc, wqkv_ref[2 * num_heads + h],
                         preferred_element_type=jnp.float32) + bqkv_ref[2 * num_heads + h]

            # Scaled dot-product attention (max-stabilized softmax).
            s = jnp.dot(qh, kh.T, preferred_element_type=jnp.float32) * scale
            s = s - jnp.max(s, axis=-1, keepdims=True)
            p = jnp.exp(s)
            p = p * pl.reciprocal(jnp.sum(p, axis=-1, keepdims=True), approx=True)

            attn_ref[b, h] = p       # attention_weights output, per head

            oh = jnp.dot(p, vh, preferred_element_type=jnp.float32)      # (S_dec, hd)
            # Fold the head-concat into the fc projection: fc(concat_h o_h) = sum_h o_h @ W_o[h].
            acc = acc + jnp.dot(oh, wo_ref[h], preferred_element_type=jnp.float32)

        out_ref[b] = acc + b_o


def cross_attention(encoder_output, masked_decoder_output, params, *, num_heads=NUM_HEADS):
    B, S_dec, D = masked_decoder_output.shape
    S_enc = encoder_output.shape[1]
    assert D % num_heads == 0
    hd = D // num_heads

    # Generation-aware batch blocking:
    #  * multi-TC chips (v7x): one batch element per grid step, parallel across cores.
    #  * single-TC chips (v5e/v6e): collapse the batch into one grid step (avoids
    #    ~0.35us/step pipeline overhead that dominates at this tiny size).
    cores = _tensorcores_per_chip()
    bb = 1 if (cores > 1 and B % cores == 0) else B
    grid = (B // bb,)

    # Host-side packing of weights into per-head slabs (no in-kernel lane slicing).
    def heads_w(w):  # (D, D) -> (H, D, hd)
        return w.reshape(D, num_heads, hd).transpose(1, 0, 2)

    def heads_b(b):  # (D,) -> (H, 1, hd)
        return b.reshape(num_heads, 1, hd)

    w_qkv = jnp.concatenate(
        [heads_w(params["wq"]), heads_w(params["wk"]), heads_w(params["wv"])], axis=0
    )                                                   # (3H, D, hd)
    b_qkv = jnp.concatenate(
        [heads_b(params["bq"]), heads_b(params["bk"]), heads_b(params["bv"])], axis=0
    )                                                   # (3H, 1, hd)
    w_o = params["wfc"].reshape(num_heads, hd, D)       # (H, hd, D)
    b_o = params["bfc"].reshape(1, D)                   # (1, D)

    kernel = functools.partial(
        cross_attention_kernel, num_heads=num_heads, head_dim=hd, block_b=bb
    )

    in_specs = [
        pl.BlockSpec((bb, S_enc, D), lambda i: (i, 0, 0)),                 # encoder_output
        pl.BlockSpec((bb, S_dec, D), lambda i: (i, 0, 0)),                 # masked_decoder_output
        pl.BlockSpec((3 * num_heads, D, hd), lambda i: (0, 0, 0)),         # packed q/k/v weights
        pl.BlockSpec((3 * num_heads, 1, hd), lambda i: (0, 0, 0)),         # packed q/k/v biases
        pl.BlockSpec((num_heads, hd, D), lambda i: (0, 0, 0)),             # packed fc weight
        pl.BlockSpec((1, D), lambda i: (0, 0)),                            # fc bias
    ]
    out_specs = [
        pl.BlockSpec((bb, num_heads, S_dec, S_enc), lambda i: (i, 0, 0, 0)),  # attention_weights
        pl.BlockSpec((bb, S_dec, D), lambda i: (i, 0, 0)),                    # fc(output)
    ]
    out_shape = (
        jax.ShapeDtypeStruct((B, num_heads, S_dec, S_enc), jnp.float32),
        jax.ShapeDtypeStruct((B, S_dec, D), jnp.float32),
    )

    return pl.pallas_call(
        kernel,
        out_shape=out_shape,
        grid_spec=pltpu.PrefetchScalarGridSpec(
            num_scalar_prefetch=0,
            grid=grid,
            in_specs=in_specs,
            out_specs=out_specs,
        ),
        compiler_params=pltpu.CompilerParams(dimension_semantics=("parallel",)),
    )(encoder_output, masked_decoder_output, w_qkv, b_qkv, w_o, b_o)


def make_params(key, d_model):
    # Mirrors torch.nn.Linear default init: U(-1/sqrt(fan_in), 1/sqrt(fan_in)).
    ks = jax.random.split(key, 8)

    def lin(kw, kb, fin, fout):
        bound = 1.0 / math.sqrt(fin)
        w = jax.random.uniform(kw, (fin, fout), jnp.float32, -bound, bound)
        b = jax.random.uniform(kb, (fout,), jnp.float32, -bound, bound)
        return w, b

    wq, bq = lin(ks[0], ks[1], d_model, d_model)
    wk, bk = lin(ks[2], ks[3], d_model, d_model)
    wv, bv = lin(ks[4], ks[5], d_model, d_model)
    wfc, bfc = lin(ks[6], ks[7], d_model, d_model)
    return dict(wq=wq, bq=bq, wk=wk, bk=bk, wv=wv, bv=bv, wfc=wfc, bfc=bfc)


def reference_cross_attention(enc, dec, p, *, num_heads=NUM_HEADS):
    # Pure-JAX replica of the PyTorch CrossAttention forward pass.
    B, S_dec, D = dec.shape
    S_enc = enc.shape[1]
    hd = D // num_heads
    q = dec @ p["wq"] + p["bq"]
    k = enc @ p["wk"] + p["bk"]
    v = enc @ p["wv"] + p["bv"]
    q = q.reshape(B, S_dec, num_heads, hd).transpose(0, 2, 1, 3)
    k = k.reshape(B, S_enc, num_heads, hd).transpose(0, 2, 1, 3)
    v = v.reshape(B, S_enc, num_heads, hd).transpose(0, 2, 1, 3)
    scores = jnp.einsum("bhqd,bhkd->bhqk", q, k) / math.sqrt(hd)
    attn = jax.nn.softmax(scores, axis=-1)
    out = jnp.einsum("bhqk,bhkd->bhqd", attn, v).transpose(0, 2, 1, 3).reshape(B, S_dec, D)
    return attn, out @ p["wfc"] + p["bfc"]


if __name__ == "__main__":
    key = jax.random.PRNGKey(0)
    k_enc, k_dec, k_p = jax.random.split(key, 3)
    enc = jax.random.normal(k_enc, (BATCH, SEQ_ENC, D_MODEL), jnp.float32)
    dec = jax.random.normal(k_dec, (BATCH, SEQ_DEC, D_MODEL), jnp.float32)
    params = make_params(k_p, D_MODEL)

    attn_w, out = cross_attention(enc, dec, params)
    attn_w, out = jax.block_until_ready((attn_w, out))

    ref_attn, ref_out = reference_cross_attention(enc, dec, params)
    assert attn_w.shape == (BATCH, NUM_HEADS, SEQ_DEC, SEQ_ENC)
    assert out.shape == (BATCH, SEQ_DEC, D_MODEL)
    # Slightly relaxed tolerance vs 1e-4 because of the approx (EUP) softmax reciprocal.
    assert jnp.allclose(attn_w, ref_attn, atol=2e-3, rtol=2e-3), "attention weights mismatch"
    assert jnp.allclose(out, ref_out, atol=2e-3, rtol=2e-3), "fc output mismatch"

    print("KERNEL_OK")
</pallas_src>

<mosaic_0001>
module attributes {stable_mosaic.version = 11 : i64} {
  func.func @cross_attention_kernel(%arg0: i32, %arg1: memref<2x16x32xf32, #tpu.memory_space<vmem>>, %arg2: memref<2x8x32xf32, #tpu.memory_space<vmem>>, %arg3: memref<6x32x16xf32, #tpu.memory_space<vmem>>, %arg4: memref<6x1x16xf32, #tpu.memory_space<vmem>>, %arg5: memref<2x16x32xf32, #tpu.memory_space<vmem>>, %arg6: memref<1x32xf32, #tpu.memory_space<vmem>>, %arg7: memref<2x2x8x16xf32, #tpu.memory_space<vmem>>, %arg8: memref<2x8x32xf32, #tpu.memory_space<vmem>>) attributes {dimension_semantics = [#tpu.dimension_semantics<parallel>], iteration_bounds = array<i64: 1>, scalar_prefetch = 0 : i64, scratch_operands = 0 : i64, tpu.core_type = #tpu.core_type<tc>, window_params = [{transform_indices = @transform_0, window_bounds = array<i64: 2, 16, 32>}, {transform_indices = @transform_1, window_bounds = array<i64: 2, 8, 32>}, {pipeline_mode = #tpu.pipeline_mode<synchronous>, transform_indices = @transform_2, window_bounds = array<i64: 6, 32, 16>}, {pipeline_mode = #tpu.pipeline_mode<synchronous>, transform_indices = @transform_3, window_bounds = array<i64: 6, 1, 16>}, {pipeline_mode = #tpu.pipeline_mode<synchronous>, transform_indices = @transform_4, window_bounds = array<i64: 2, 16, 32>}, {pipeline_mode = #tpu.pipeline_mode<synchronous>, transform_indices = @transform_5, window_bounds = array<i64: 1, 32>}, {transform_indices = @transform_6, window_bounds = array<i64: 2, 2, 8, 16>}, {transform_indices = @transform_7, window_bounds = array<i64: 2, 8, 32>}]} {
    %c0 = arith.constant 0 : index
    %c0_0 = arith.constant 0 : index
    %0 = vector.load %arg6[%c0, %c0_0] : memref<1x32xf32, #tpu.memory_space<vmem>>, vector<1x32xf32>
    %c0_1 = arith.constant 0 : index
    %c0_2 = arith.constant 0 : index
    %c0_3 = arith.constant 0 : index
    %1 = vector.load %arg1[%c0_1, %c0_2, %c0_3] : memref<2x16x32xf32, #tpu.memory_space<vmem>>, vector<1x16x32xf32>
    %2 = vector.shape_cast %1 : vector<1x16x32xf32> to vector<16x32xf32>
    %c0_4 = arith.constant 0 : index
    %c0_5 = arith.constant 0 : index
    %c0_6 = arith.constant 0 : index
    %3 = vector.load %arg2[%c0_4, %c0_5, %c0_6] : memref<2x8x32xf32, #tpu.memory_space<vmem>>, vector<1x8x32xf32>
    %4 = vector.shape_cast %3 : vector<1x8x32xf32> to vector<8x32xf32>
    %cst = arith.constant 0.000000e+00 : f32
    %5 = vector.broadcast %cst : f32 to vector<8x32xf32>
    %c0_7 = arith.constant 0 : index
    %c0_8 = arith.constant 0 : index
    %c0_9 = arith.constant 0 : index
    %6 = vector.load %arg3[%c0_7, %c0_8, %c0_9] : memref<6x32x16xf32, #tpu.memory_space<vmem>>, vector<1x32x16xf32>
    %7 = vector.shape_cast %6 : vector<1x32x16xf32> to vector<32x16xf32>
    %cst_10 = arith.constant dense<0.000000e+00> : vector<8x16xf32>
    %8 = tpu.matmul %4, %7, %cst_10 {dimension_numbers = #tpu.dot_dimension_numbers<[1], [0], [0], [1], [0, 0, 1, 1], [], []>} : vector<8x32xf32>, vector<32x16xf32>, vector<8x16xf32> -> vector<8x16xf32>
    %c0_11 = arith.constant 0 : index
    %c0_12 = arith.constant 0 : index
    %c0_13 = arith.constant 0 : index
    %9 = vector.load %arg4[%c0_11, %c0_12, %c0_13] : memref<6x1x16xf32, #tpu.memory_space<vmem>>, vector<1x1x16xf32>
    %10 = vector.shape_cast %9 : vector<1x1x16xf32> to vector<1x16xf32>
    %11 = vector.broadcast %10 : vector<1x16xf32> to vector<8x16xf32>
    %12 = arith.addf %8, %11 : vector<8x16xf32>
    %c2 = arith.constant 2 : index
    %c0_14 = arith.constant 0 : index
    %c0_15 = arith.constant 0 : index
    %13 = vector.load %arg3[%c2, %c0_14, %c0_15] : memref<6x32x16xf32, #tpu.memory_space<vmem>>, vector<1x32x16xf32>
    %14 = vector.shape_cast %13 : vector<1x32x16xf32> to vector<32x16xf32>
    %cst_16 = arith.constant dense<0.000000e+00> : vector<16x16xf32>
    %15 = tpu.matmul %2, %14, %cst_16 {dimension_numbers = #tpu.dot_dimension_numbers<[1], [0], [0], [1], [0, 0, 1, 1], [], []>} : vector<16x32xf32>, vector<32x16xf32>, vector<16x16xf32> -> vector<16x16xf32>
    %c2_17 = arith.constant 2 : index
    %c0_18 = arith.constant 0 : index
    %c0_19 = arith.constant 0 : index
    %16 = vector.load %arg4[%c2_17, %c0_18, %c0_19] : memref<6x1x16xf32, #tpu.memory_space<vmem>>, vector<1x1x16xf32>
    %17 = vector.shape_cast %16 : vector<1x1x16xf32> to vector<1x16xf32>
    %18 = vector.broadcast %17 : vector<1x16xf32> to vector<16x16xf32>
    %19 = arith.addf %15, %18 : vector<16x16xf32>
    %c4 = arith.constant 4 : index
    %c0_20 = arith.constant 0 : index
    %c0_21 = arith.constant 0 : index
    %20 = vector.load %arg3[%c4, %c0_20, %c0_21] : memref<6x32x16xf32, #tpu.memory_space<vmem>>, vector<1x32x16xf32>
    %21 = vector.shape_cast %20 : vector<1x32x16xf32> to vector<32x16xf32>
    %cst_22 = arith.constant dense<0.000000e+00> : vector<16x16xf32>
    %22 = tpu.matmul %2, %21, %cst_22 {dimension_numbers = #tpu.dot_dimension_numbers<[1], [0], [0], [1], [0, 0, 1, 1], [], []>} : vector<16x32xf32>, vector<32x16xf32>, vector<16x16xf32> -> vector<16x16xf32>
    %c4_23 = arith.constant 4 : index
    %c0_24 = arith.constant 0 : index
    %c0_25 = arith.constant 0 : index
    %23 = vector.load %arg4[%c4_23, %c0_24, %c0_25] : memref<6x1x16xf32, #tpu.memory_space<vmem>>, vector<1x1x16xf32>
    %24 = vector.shape_cast %23 : vector<1x1x16xf32> to vector<1x16xf32>
    %25 = vector.broadcast %24 : vector<1x16xf32> to vector<16x16xf32>
    %26 = arith.addf %22, %25 : vector<16x16xf32>
    %27 = tpu.transpose %19, [1, 0] : vector<16x16xf32> -> vector<16x16xf32>
    %cst_26 = arith.constant dense<0.000000e+00> : vector<8x16xf32>
    %28 = tpu.matmul %12, %27, %cst_26 {dimension_numbers = #tpu.dot_dimension_numbers<[1], [0], [0], [1], [0, 0, 1, 1], [], []>} : vector<8x16xf32>, vector<16x16xf32>, vector<8x16xf32> -> vector<8x16xf32>
    %cst_27 = arith.constant 2.500000e-01 : f32
    %29 = vector.broadcast %cst_27 : f32 to vector<8x16xf32>
    %30 = arith.mulf %28, %29 : vector<8x16xf32>
    %cst_28 = arith.constant dense<0xFF800000> : vector<8xf32>
    %31 = vector.multi_reduction <maximumf>, %30, %cst_28 [1] : vector<8x16xf32> to vector<8xf32>
    %32 = vector.shape_cast %31 : vector<8xf32> to vector<8x1xf32>
    %33 = vector.broadcast %32 : vector<8x1xf32> to vector<8x16xf32>
    %34 = arith.subf %30, %33 : vector<8x16xf32>
    %35 = math.exp %34 : vector<8x16xf32>
    %cst_29 = arith.constant dense<0.000000e+00> : vector<8xf32>
    %36 = vector.multi_reduction <add>, %35, %cst_29 [1] : vector<8x16xf32> to vector<8xf32>
    %37 = vector.shape_cast %36 : vector<8xf32> to vector<8x1xf32>
    %38 = tpu.reciprocal %37 {approx = true} : vector<8x1xf32> -> vector<8x1xf32>
    %39 = vector.broadcast %38 : vector<8x1xf32> to vector<8x16xf32>
    %40 = arith.mulf %35, %39 : vector<8x16xf32>
    %c0_30 = arith.constant 0 : index
    %c0_31 = arith.constant 0 : index
    %c0_32 = arith.constant 0 : index
    %c0_33 = arith.constant 0 : index
    %41 = vector.load %arg7[%c0_30, %c0_31, %c0_32, %c0_33] : memref<2x2x8x16xf32, #tpu.memory_space<vmem>>, vector<1x1x8x16xf32>
    %42 = vector.shape_cast %41 : vector<1x1x8x16xf32> to vector<8x16xf32>
    %43 = vector.shape_cast %40 : vector<8x16xf32> to vector<1x1x8x16xf32>
    tpu.vector_store %arg7[%c0_30, %c0_31, %c0_32, %c0_33], %43 {strides = array<i32>} : memref<2x2x8x16xf32, #tpu.memory_space<vmem>>, vector<1x1x8x16xf32>,
    %cst_34 = arith.constant dense<0.000000e+00> : vector<8x16xf32>
    %44 = tpu.matmul %40, %26, %cst_34 {dimension_numbers = #tpu.dot_dimension_numbers<[1], [0], [0], [1], [0, 0, 1, 1], [], []>} : vector<8x16xf32>, vector<16x16xf32>, vector<8x16xf32> -> vector<8x16xf32>
    %c0_35 = arith.constant 0 : index
    %c0_36 = arith.constant 0 : index
    %c0_37 = arith.constant 0 : index
    %45 = vector.load %arg5[%c0_35, %c0_36, %c0_37] : memref<2x16x32xf32, #tpu.memory_space<vmem>>, vector<1x16x32xf32>
    %46 = vector.shape_cast %45 : vector<1x16x32xf32> to vector<16x32xf32>
    %cst_38 = arith.constant dense<0.000000e+00> : vector<8x32xf32>
    %47 = tpu.matmul %44, %46, %cst_38 {dimension_numbers = #tpu.dot_dimension_numbers<[1], [0], [0], [1], [0, 0, 1, 1], [], []>} : vector<8x16xf32>, vector<16x32xf32>, vector<8x32xf32> -> vector<8x32xf32>
    %48 = arith.addf %5, %47 : vector<8x32xf32>
    %c1 = arith.constant 1 : index
    %c0_39 = arith.constant 0 : index
    %c0_40 = arith.constant 0 : index
    %49 = vector.load %arg3[%c1, %c0_39, %c0_40] : memref<6x32x16xf32, #tpu.memory_space<vmem>>, vector<1x32x16xf32>
    %50 = vector.shape_cast %49 : vector<1x32x16xf32> to vector<32x16xf32>
    %cst_41 = arith.constant dense<0.000000e+00> : vector<8x16xf32>
    %51 = tpu.matmul %4, %50, %cst_41 {dimension_numbers = #tpu.dot_dimension_numbers<[1], [0], [0], [1], [0, 0, 1, 1], [], []>} : vector<8x32xf32>, vector<32x16xf32>, vector<8x16xf32> -> vector<8x16xf32>
    %c1_42 = arith.constant 1 : index
    %c0_43 = arith.constant 0 : index
    %c0_44 = arith.constant 0 : index
    %52 = vector.load %arg4[%c1_42, %c0_43, %c0_44] : memref<6x1x16xf32, #tpu.memory_space<vmem>>, vector<1x1x16xf32>
    %53 = vector.shape_cast %52 : vector<1x1x16xf32> to vector<1x16xf32>
    %54 = vector.broadcast %53 : vector<1x16xf32> to vector<8x16xf32>
    %55 = arith.addf %51, %54 : vector<8x16xf32>
    %c3 = arith.constant 3 : index
    %c0_45 = arith.constant 0 : index
    %c0_46 = arith.constant 0 : index
    %56 = vector.load %arg3[%c3, %c0_45, %c0_46] : memref<6x32x16xf32, #tpu.memory_space<vmem>>, vector<1x32x16xf32>
    %57 = vector.shape_cast %56 : vector<1x32x16xf32> to vector<32x16xf32>
    %cst_47 = arith.constant dense<0.000000e+00> : vector<16x16xf32>
    %58 = tpu.matmul %2, %57, %cst_47 {dimension_numbers = #tpu.dot_dimension_numbers<[1], [0], [0], [1], [0, 0, 1, 1], [], []>} : vector<16x32xf32>, vector<32x16xf32>, vector<16x16xf32> -> vector<16x16xf32>
    %c3_48 = arith.constant 3 : index
    %c0_49 = arith.constant 0 : index
    %c0_50 = arith.constant 0 : index
    %59 = vector.load %arg4[%c3_48, %c0_49, %c0_50] : memref<6x1x16xf32, #tpu.memory_space<vmem>>, vector<1x1x16xf32>
    %60 = vector.shape_cast %59 : vector<1x1x16xf32> to vector<1x16xf32>
    %61 = vector.broadcast %60 : vector<1x16xf32> to vector<16x16xf32>
    %62 = arith.addf %58, %61 : vector<16x16xf32>
    %c5 = arith.constant 5 : index
    %c0_51 = arith.constant 0 : index
    %c0_52 = arith.constant 0 : index
    %63 = vector.load %arg3[%c5, %c0_51, %c0_52] : memref<6x32x16xf32, #tpu.memory_space<vmem>>, vector<1x32x16xf32>
    %64 = vector.shape_cast %63 : vector<1x32x16xf32> to vector<32x16xf32>
    %cst_53 = arith.constant dense<0.000000e+00> : vector<16x16xf32>
    %65 = tpu.matmul %2, %64, %cst_53 {dimension_numbers = #tpu.dot_dimension_numbers<[1], [0], [0], [1], [0, 0, 1, 1], [], []>} : vector<16x32xf32>, vector<32x16xf32>, vector<16x16xf32> -> vector<16x16xf32>
    %c5_54 = arith.constant 5 : index
    %c0_55 = arith.constant 0 : index
    %c0_56 = arith.constant 0 : index
    %66 = vector.load %arg4[%c5_54, %c0_55, %c0_56] : memref<6x1x16xf32, #tpu.memory_space<vmem>>, vector<1x1x16xf32>
    %67 = vector.shape_cast %66 : vector<1x1x16xf32> to vector<1x16xf32>
    %68 = vector.broadcast %67 : vector<1x16xf32> to vector<16x16xf32>
    %69 = arith.addf %65, %68 : vector<16x16xf32>
    %70 = tpu.transpose %62, [1, 0] : vector<16x16xf32> -> vector<16x16xf32>
    %cst_57 = arith.constant dense<0.000000e+00> : vector<8x16xf32>
    %71 = tpu.matmul %55, %70, %cst_57 {dimension_numbers = #tpu.dot_dimension_numbers<[1], [0], [0], [1], [0, 0, 1, 1], [], []>} : vector<8x16xf32>, vector<16x16xf32>, vector<8x16xf32> -> vector<8x16xf32>
    %cst_58 = arith.constant 2.500000e-01 : f32
    %72 = vector.broadcast %cst_58 : f32 to vector<8x16xf32>
    %73 = arith.mulf %71, %72 : vector<8x16xf32>
    %cst_59 = arith.constant dense<0xFF800000> : vector<8xf32>
    %74 = vector.multi_reduction <maximumf>, %73, %cst_59 [1] : vector<8x16xf32> to vector<8xf32>
    %75 = vector.shape_cast %74 : vector<8xf32> to vector<8x1xf32>
    %76 = vector.broadcast %75 : vector<8x1xf32> to vector<8x16xf32>
    %77 = arith.subf %73, %76 : vector<8x16xf32>
    %78 = math.exp %77 : vector<8x16xf32>
    %cst_60 = arith.constant dense<0.000000e+00> : vector<8xf32>
    %79 = vector.multi_reduction <add>, %78, %cst_60 [1] : vector<8x16xf32> to vector<8xf32>
    %80 = vector.shape_cast %79 : vector<8xf32> to vector<8x1xf32>
    %81 = tpu.reciprocal %80 {approx = true} : vector<8x1xf32> -> vector<8x1xf32>
    %82 = vector.broadcast %81 : vector<8x1xf32> to vector<8x16xf32>
    %83 = arith.mulf %78, %82 : vector<8x16xf32>
    %c0_61 = arith.constant 0 : index
    %c1_62 = arith.constant 1 : index
    %c0_63 = arith.constant 0 : index
    %c0_64 = arith.constant 0 : index
    %84 = vector.load %arg7[%c0_61, %c1_62, %c0_63, %c0_64] : memref<2x2x8x16xf32, #tpu.memory_space<vmem>>, vector<1x1x8x16xf32>
    %85 = vector.shape_cast %84 : vector<1x1x8x16xf32> to vector<8x16xf32>
    %86 = vector.shape_cast %83 : vector<8x16xf32> to vector<1x1x8x16xf32>
    tpu.vector_store %arg7[%c0_61, %c1_62, %c0_63, %c0_64], %86 {strides = array<i32>} : memref<2x2x8x16xf32, #tpu.memory_space<vmem>>, vector<1x1x8x16xf32>,
    %cst_65 = arith.constant dense<0.000000e+00> : vector<8x16xf32>
    %87 = tpu.matmul %83, %69, %cst_65 {dimension_numbers = #tpu.dot_dimension_numbers<[1], [0], [0], [1], [0, 0, 1, 1], [], []>} : vector<8x16xf32>, vector<16x16xf32>, vector<8x16xf32> -> vector<8x16xf32>
    %c1_66 = arith.constant 1 : index
    %c0_67 = arith.constant 0 : index
    %c0_68 = arith.constant 0 : index
    %88 = vector.load %arg5[%c1_66, %c0_67, %c0_68] : memref<2x16x32xf32, #tpu.memory_space<vmem>>, vector<1x16x32xf32>
    %89 = vector.shape_cast %88 : vector<1x16x32xf32> to vector<16x32xf32>
    %cst_69 = arith.constant dense<0.000000e+00> : vector<8x32xf32>
    %90 = tpu.matmul %87, %89, %cst_69 {dimension_numbers = #tpu.dot_dimension_numbers<[1], [0], [0], [1], [0, 0, 1, 1], [], []>} : vector<8x16xf32>, vector<16x32xf32>, vector<8x32xf32> -> vector<8x32xf32>
    %91 = arith.addf %48, %90 : vector<8x32xf32>
    %92 = vector.broadcast %0 : vector<1x32xf32> to vector<8x32xf32>
    %93 = arith.addf %91, %92 : vector<8x32xf32>
    %c0_70 = arith.constant 0 : index
    %c0_71 = arith.constant 0 : index
    %c0_72 = arith.constant 0 : index
    %94 = vector.load %arg8[%c0_70, %c0_71, %c0_72] : memref<2x8x32xf32, #tpu.memory_space<vmem>>, vector<1x8x32xf32>
    %95 = vector.shape_cast %94 : vector<1x8x32xf32> to vector<8x32xf32>
    %96 = vector.shape_cast %93 : vector<8x32xf32> to vector<1x8x32xf32>
    tpu.vector_store %arg8[%c0_70, %c0_71, %c0_72], %96 {strides = array<i32>} : memref<2x8x32xf32, #tpu.memory_space<vmem>>, vector<1x8x32xf32>,
    %c1_73 = arith.constant 1 : index
    %c0_74 = arith.constant 0 : index
    %c0_75 = arith.constant 0 : index
    %97 = vector.load %arg1[%c1_73, %c0_74, %c0_75] : memref<2x16x32xf32, #tpu.memory_space<vmem>>, vector<1x16x32xf32>
    %98 = vector.shape_cast %97 : vector<1x16x32xf32> to vector<16x32xf32>
    %c1_76 = arith.constant 1 : index
    %c0_77 = arith.constant 0 : index
    %c0_78 = arith.constant 0 : index
    %99 = vector.load %arg2[%c1_76, %c0_77, %c0_78] : memref<2x8x32xf32, #tpu.memory_space<vmem>>, vector<1x8x32xf32>
    %100 = vector.shape_cast %99 : vector<1x8x32xf32> to vector<8x32xf32>
    %cst_79 = arith.constant 0.000000e+00 : f32
    %101 = vector.broadcast %cst_79 : f32 to vector<8x32xf32>
    %c0_80 = arith.constant 0 : index
    %c0_81 = arith.constant 0 : index
    %c0_82 = arith.constant 0 : index
    %102 = vector.load %arg3[%c0_80, %c0_81, %c0_82] : memref<6x32x16xf32, #tpu.memory_space<vmem>>, vector<1x32x16xf32>
    %103 = vector.shape_cast %102 : vector<1x32x16xf32> to vector<32x16xf32>
    %cst_83 = arith.constant dense<0.000000e+00> : vector<8x16xf32>
    %104 = tpu.matmul %100, %103, %cst_83 {dimension_numbers = #tpu.dot_dimension_numbers<[1], [0], [0], [1], [0, 0, 1, 1], [], []>} : vector<8x32xf32>, vector<32x16xf32>, vector<8x16xf32> -> vector<8x16xf32>
    %c0_84 = arith.constant 0 : index
    %c0_85 = arith.constant 0 : index
    %c0_86 = arith.constant 0 : index
    %105 = vector.load %arg4[%c0_84, %c0_85, %c0_86] : memref<6x1x16xf32, #tpu.memory_space<vmem>>, vector<1x1x16xf32>
    %106 = vector.shape_cast %105 : vector<1x1x16xf32> to vector<1x16xf32>
    %107 = vector.broadcast %106 : vector<1x16xf32> to vector<8x16xf32>
    %108 = arith.addf %104, %107 : vector<8x16xf32>
    %c2_87 = arith.constant 2 : index
    %c0_88 = arith.constant 0 : index
    %c0_89 = arith.constant 0 : index
    %109 = vector.load %arg3[%c2_87, %c0_88, %c0_89] : memref<6x32x16xf32, #tpu.memory_space<vmem>>, vector<1x32x16xf32>
    %110 = vector.shape_cast %109 : vector<1x32x16xf32> to vector<32x16xf32>
    %cst_90 = arith.constant dense<0.000000e+00> : vector<16x16xf32>
    %111 = tpu.matmul %98, %110, %cst_90 {dimension_numbers = #tpu.dot_dimension_numbers<[1], [0], [0], [1], [0, 0, 1, 1], [], []>} : vector<16x32xf32>, vector<32x16xf32>, vector<16x16xf32> -> vector<16x16xf32>
    %c2_91 = arith.constant 2 : index
    %c0_92 = arith.constant 0 : index
    %c0_93 = arith.constant 0 : index
    %112 = vector.load %arg4[%c2_91, %c0_92, %c0_93] : memref<6x1x16xf32, #tpu.memory_space<vmem>>, vector<1x1x16xf32>
    %113 = vector.shape_cast %112 : vector<1x1x16xf32> to vector<1x16xf32>
    %114 = vector.broadcast %113 : vector<1x16xf32> to vector<16x16xf32>
    %115 = arith.addf %111, %114 : vector<16x16xf32>
    %c4_94 = arith.constant 4 : index
    %c0_95 = arith.constant 0 : index
    %c0_96 = arith.constant 0 : index
    %116 = vector.load %arg3[%c4_94, %c0_95, %c0_96] : memref<6x32x16xf32, #tpu.memory_space<vmem>>, vector<1x32x16xf32>
    %117 = vector.shape_cast %116 : vector<1x32x16xf32> to vector<32x16xf32>
    %cst_97 = arith.constant dense<0.000000e+00> : vector<16x16xf32>
    %118 = tpu.matmul %98, %117, %cst_97 {dimension_numbers = #tpu.dot_dimension_numbers<[1], [0], [0], [1], [0, 0, 1, 1], [], []>} : vector<16x32xf32>, vector<32x16xf32>, vector<16x16xf32> -> vector<16x16xf32>
    %c4_98 = arith.constant 4 : index
    %c0_99 = arith.constant 0 : index
    %c0_100 = arith.constant 0 : index
    %119 = vector.load %arg4[%c4_98, %c0_99, %c0_100] : memref<6x1x16xf32, #tpu.memory_space<vmem>>, vector<1x1x16xf32>
    %120 = vector.shape_cast %119 : vector<1x1x16xf32> to vector<1x16xf32>
    %121 = vector.broadcast %120 : vector<1x16xf32> to vector<16x16xf32>
    %122 = arith.addf %118, %121 : vector<16x16xf32>
    %123 = tpu.transpose %115, [1, 0] : vector<16x16xf32> -> vector<16x16xf32>
    %cst_101 = arith.constant dense<0.000000e+00> : vector<8x16xf32>
    %124 = tpu.matmul %108, %123, %cst_101 {dimension_numbers = #tpu.dot_dimension_numbers<[1], [0], [0], [1], [0, 0, 1, 1], [], []>} : vector<8x16xf32>, vector<16x16xf32>, vector<8x16xf32> -> vector<8x16xf32>
    %cst_102 = arith.constant 2.500000e-01 : f32
    %125 = vector.broadcast %cst_102 : f32 to vector<8x16xf32>
    %126 = arith.mulf %124, %125 : vector<8x16xf32>
    %cst_103 = arith.constant dense<0xFF800000> : vector<8xf32>
    %127 = vector.multi_reduction <maximumf>, %126, %cst_103 [1] : vector<8x16xf32> to vector<8xf32>
    %128 = vector.shape_cast %127 : vector<8xf32> to vector<8x1xf32>
    %129 = vector.broadcast %128 : vector<8x1xf32> to vector<8x16xf32>
    %130 = arith.subf %126, %129 : vector<8x16xf32>
    %131 = math.exp %130 : vector<8x16xf32>
    %cst_104 = arith.constant dense<0.000000e+00> : vector<8xf32>
    %132 = vector.multi_reduction <add>, %131, %cst_104 [1] : vector<8x16xf32> to vector<8xf32>
    %133 = vector.shape_cast %132 : vector<8xf32> to vector<8x1xf32>
    %134 = tpu.reciprocal %133 {approx = true} : vector<8x1xf32> -> vector<8x1xf32>
    %135 = vector.broadcast %134 : vector<8x1xf32> to vector<8x16xf32>
    %136 = arith.mulf %131, %135 : vector<8x16xf32>
    %c1_105 = arith.constant 1 : index
    %c0_106 = arith.constant 0 : index
    %c0_107 = arith.constant 0 : index
    %c0_108 = arith.constant 0 : index
    %137 = vector.load %arg7[%c1_105, %c0_106, %c0_107, %c0_108] : memref<2x2x8x16xf32, #tpu.memory_space<vmem>>, vector<1x1x8x16xf32>
    %138 = vector.shape_cast %137 : vector<1x1x8x16xf32> to vector<8x16xf32>
    %139 = vector.shape_cast %136 : vector<8x16xf32> to vector<1x1x8x16xf32>
    tpu.vector_store %arg7[%c1_105, %c0_106, %c0_107, %c0_108], %139 {strides = array<i32>} : memref<2x2x8x16xf32, #tpu.memory_space<vmem>>, vector<1x1x8x16xf32>,
    %cst_109 = arith.constant dense<0.000000e+00> : vector<8x16xf32>
    %140 = tpu.matmul %136, %122, %cst_109 {dimension_numbers = #tpu.dot_dimension_numbers<[1], [0], [0], [1], [0, 0, 1, 1], [], []>} : vector<8x16xf32>, vector<16x16xf32>, vector<8x16xf32> -> vector<8x16xf32>
    %c0_110 = arith.constant 0 : index
    %c0_111 = arith.constant 0 : index
    %c0_112 = arith.constant 0 : index
    %141 = vector.load %arg5[%c0_110, %c0_111, %c0_112] : memref<2x16x32xf32, #tpu.memory_space<vmem>>, vector<1x16x32xf32>
    %142 = vector.shape_cast %141 : vector<1x16x32xf32> to vector<16x32xf32>
    %cst_113 = arith.constant dense<0.000000e+00> : vector<8x32xf32>
    %143 = tpu.matmul %140, %142, %cst_113 {dimension_numbers = #tpu.dot_dimension_numbers<[1], [0], [0], [1], [0, 0, 1, 1], [], []>} : vector<8x16xf32>, vector<16x32xf32>, vector<8x32xf32> -> vector<8x32xf32>
    %144 = arith.addf %101, %143 : vector<8x32xf32>
    %c1_114 = arith.constant 1 : index
    %c0_115 = arith.constant 0 : index
    %c0_116 = arith.constant 0 : index
    %145 = vector.load %arg3[%c1_114, %c0_115, %c0_116] : memref<6x32x16xf32, #tpu.memory_space<vmem>>, vector<1x32x16xf32>
    %146 = vector.shape_cast %145 : vector<1x32x16xf32> to vector<32x16xf32>
    %cst_117 = arith.constant dense<0.000000e+00> : vector<8x16xf32>
    %147 = tpu.matmul %100, %146, %cst_117 {dimension_numbers = #tpu.dot_dimension_numbers<[1], [0], [0], [1], [0, 0, 1, 1], [], []>} : vector<8x32xf32>, vector<32x16xf32>, vector<8x16xf32> -> vector<8x16xf32>
    %c1_118 = arith.constant 1 : index
    %c0_119 = arith.constant 0 : index
    %c0_120 = arith.constant 0 : index
    %148 = vector.load %arg4[%c1_118, %c0_119, %c0_120] : memref<6x1x16xf32, #tpu.memory_space<vmem>>, vector<1x1x16xf32>
    %149 = vector.shape_cast %148 : vector<1x1x16xf32> to vector<1x16xf32>
    %150 = vector.broadcast %149 : vector<1x16xf32> to vector<8x16xf32>
    %151 = arith.addf %147, %150 : vector<8x16xf32>
    %c3_121 = arith.constant 3 : index
    %c0_122 = arith.constant 0 : index
    %c0_123 = arith.constant 0 : index
    %152 = vector.load %arg3[%c3_121, %c0_122, %c0_123] : memref<6x32x16xf32, #tpu.memory_space<vmem>>, vector<1x32x16xf32>
    %153 = vector.shape_cast %152 : vector<1x32x16xf32> to vector<32x16xf32>
    %cst_124 = arith.constant dense<0.000000e+00> : vector<16x16xf32>
    %154 = tpu.matmul %98, %153, %cst_124 {dimension_numbers = #tpu.dot_dimension_numbers<[1], [0], [0], [1], [0, 0, 1, 1], [], []>} : vector<16x32xf32>, vector<32x16xf32>, vector<16x16xf32> -> vector<16x16xf32>
    %c3_125 = arith.constant 3 : index
    %c0_126 = arith.constant 0 : index
    %c0_127 = arith.constant 0 : index
    %155 = vector.load %arg4[%c3_125, %c0_126, %c0_127] : memref<6x1x16xf32, #tpu.memory_space<vmem>>, vector<1x1x16xf32>
    %156 = vector.shape_cast %155 : vector<1x1x16xf32> to vector<1x16xf32>
    %157 = vector.broadcast %156 : vector<1x16xf32> to vector<16x16xf32>
    %158 = arith.addf %154, %157 : vector<16x16xf32>
    %c5_128 = arith.constant 5 : index
    %c0_129 = arith.constant 0 : index
    %c0_130 = arith.constant 0 : index
    %159 = vector.load %arg3[%c5_128, %c0_129, %c0_130] : memref<6x32x16xf32, #tpu.memory_space<vmem>>, vector<1x32x16xf32>
    %160 = vector.shape_cast %159 : vector<1x32x16xf32> to vector<32x16xf32>
    %cst_131 = arith.constant dense<0.000000e+00> : vector<16x16xf32>
    %161 = tpu.matmul %98, %160, %cst_131 {dimension_numbers = #tpu.dot_dimension_numbers<[1], [0], [0], [1], [0, 0, 1, 1], [], []>} : vector<16x32xf32>, vector<32x16xf32>, vector<16x16xf32> -> vector<16x16xf32>
    %c5_132 = arith.constant 5 : index
    %c0_133 = arith.constant 0 : index
    %c0_134 = arith.constant 0 : index
    %162 = vector.load %arg4[%c5_132, %c0_133, %c0_134] : memref<6x1x16xf32, #tpu.memory_space<vmem>>, vector<1x1x16xf32>
    %163 = vector.shape_cast %162 : vector<1x1x16xf32> to vector<1x16xf32>
    %164 = vector.broadcast %163 : vector<1x16xf32> to vector<16x16xf32>
    %165 = arith.addf %161, %164 : vector<16x16xf32>
    %166 = tpu.transpose %158, [1, 0] : vector<16x16xf32> -> vector<16x16xf32>
    %cst_135 = arith.constant dense<0.000000e+00> : vector<8x16xf32>
    %167 = tpu.matmul %151, %166, %cst_135 {dimension_numbers = #tpu.dot_dimension_numbers<[1], [0], [0], [1], [0, 0, 1, 1], [], []>} : vector<8x16xf32>, vector<16x16xf32>, vector<8x16xf32> -> vector<8x16xf32>
    %cst_136 = arith.constant 2.500000e-01 : f32
    %168 = vector.broadcast %cst_136 : f32 to vector<8x16xf32>
    %169 = arith.mulf %167, %168 : vector<8x16xf32>
    %cst_137 = arith.constant dense<0xFF800000> : vector<8xf32>
    %170 = vector.multi_reduction <maximumf>, %169, %cst_137 [1] : vector<8x16xf32> to vector<8xf32>
    %171 = vector.shape_cast %170 : vector<8xf32> to vector<8x1xf32>
    %172 = vector.broadcast %171 : vector<8x1xf32> to vector<8x16xf32>
    %173 = arith.subf %169, %172 : vector<8x16xf32>
    %174 = math.exp %173 : vector<8x16xf32>
    %cst_138 = arith.constant dense<0.000000e+00> : vector<8xf32>
    %175 = vector.multi_reduction <add>, %174, %cst_138 [1] : vector<8x16xf32> to vector<8xf32>
    %176 = vector.shape_cast %175 : vector<8xf32> to vector<8x1xf32>
    %177 = tpu.reciprocal %176 {approx = true} : vector<8x1xf32> -> vector<8x1xf32>
    %178 = vector.broadcast %177 : vector<8x1xf32> to vector<8x16xf32>
    %179 = arith.mulf %174, %178 : vector<8x16xf32>
    %c1_139 = arith.constant 1 : index
    %c1_140 = arith.constant 1 : index
    %c0_141 = arith.constant 0 : index
    %c0_142 = arith.constant 0 : index
    %180 = vector.load %arg7[%c1_139, %c1_140, %c0_141, %c0_142] : memref<2x2x8x16xf32, #tpu.memory_space<vmem>>, vector<1x1x8x16xf32>
    %181 = vector.shape_cast %180 : vector<1x1x8x16xf32> to vector<8x16xf32>
    %182 = vector.shape_cast %179 : vector<8x16xf32> to vector<1x1x8x16xf32>
    tpu.vector_store %arg7[%c1_139, %c1_140, %c0_141, %c0_142], %182 {strides = array<i32>} : memref<2x2x8x16xf32, #tpu.memory_space<vmem>>, vector<1x1x8x16xf32>,
    %cst_143 = arith.constant dense<0.000000e+00> : vector<8x16xf32>
    %183 = tpu.matmul %179, %165, %cst_143 {dimension_numbers = #tpu.dot_dimension_numbers<[1], [0], [0], [1], [0, 0, 1, 1], [], []>} : vector<8x16xf32>, vector<16x16xf32>, vector<8x16xf32> -> vector<8x16xf32>
    %c1_144 = arith.constant 1 : index
    %c0_145 = arith.constant 0 : index
    %c0_146 = arith.constant 0 : index
    %184 = vector.load %arg5[%c1_144, %c0_145, %c0_146] : memref<2x16x32xf32, #tpu.memory_space<vmem>>, vector<1x16x32xf32>
    %185 = vector.shape_cast %184 : vector<1x16x32xf32> to vector<16x32xf32>
    %cst_147 = arith.constant dense<0.000000e+00> : vector<8x32xf32>
    %186 = tpu.matmul %183, %185, %cst_147 {dimension_numbers = #tpu.dot_dimension_numbers<[1], [0], [0], [1], [0, 0, 1, 1], [], []>} : vector<8x16xf32>, vector<16x32xf32>, vector<8x32xf32> -> vector<8x32xf32>
    %187 = arith.addf %144, %186 : vector<8x32xf32>
    %188 = vector.broadcast %0 : vector<1x32xf32> to vector<8x32xf32>
    %189 = arith.addf %187, %188 : vector<8x32xf32>
    %c1_148 = arith.constant 1 : index
    %c0_149 = arith.constant 0 : index
    %c0_150 = arith.constant 0 : index
    %190 = vector.load %arg8[%c1_148, %c0_149, %c0_150] : memref<2x8x32xf32, #tpu.memory_space<vmem>>, vector<1x8x32xf32>
    %191 = vector.shape_cast %190 : vector<1x8x32xf32> to vector<8x32xf32>
    %192 = vector.shape_cast %189 : vector<8x32xf32> to vector<1x8x32xf32>
    tpu.vector_store %arg8[%c1_148, %c0_149, %c0_150], %192 {strides = array<i32>} : memref<2x8x32xf32, #tpu.memory_space<vmem>>, vector<1x8x32xf32>,
    return
  }
  func.func @transform_0(%arg0: i32) -> (i32, i32, i32) {
    %c0_i32 = arith.constant 0 : i32
    %c0_i32_0 = arith.constant 0 : i32
    %c0_i32_1 = arith.constant 0 : i32
    return %arg0, %c0_i32, %c0_i32_0 : i32, i32, i32
  }
  func.func @transform_1(%arg0: i32) -> (i32, i32, i32) {
    %c0_i32 = arith.constant 0 : i32
    %c0_i32_0 = arith.constant 0 : i32
    %c0_i32_1 = arith.constant 0 : i32
    return %arg0, %c0_i32, %c0_i32_0 : i32, i32, i32
  }
  func.func @transform_2(%arg0: i32) -> (i32, i32, i32) {
    %c0_i32 = arith.constant 0 : i32
    %c0_i32_0 = arith.constant 0 : i32
    %c0_i32_1 = arith.constant 0 : i32
    %c0_i32_2 = arith.constant 0 : i32
    return %c0_i32, %c0_i32_0, %c0_i32_1 : i32, i32, i32
  }
  func.func @transform_3(%arg0: i32) -> (i32, i32, i32) {
    %c0_i32 = arith.constant 0 : i32
    %c0_i32_0 = arith.constant 0 : i32
    %c0_i32_1 = arith.constant 0 : i32
    %c0_i32_2 = arith.constant 0 : i32
    return %c0_i32, %c0_i32_0, %c0_i32_1 : i32, i32, i32
  }
  func.func @transform_4(%arg0: i32) -> (i32, i32, i32) {
    %c0_i32 = arith.constant 0 : i32
    %c0_i32_0 = arith.constant 0 : i32
    %c0_i32_1 = arith.constant 0 : i32
    %c0_i32_2 = arith.constant 0 : i32
    return %c0_i32, %c0_i32_0, %c0_i32_1 : i32, i32, i32
  }
  func.func @transform_5(%arg0: i32) -> (i32, i32) {
    %c0_i32 = arith.constant 0 : i32
    %c0_i32_0 = arith.constant 0 : i32
    %c0_i32_1 = arith.constant 0 : i32
    return %c0_i32, %c0_i32_0 : i32, i32
  }
  func.func @transform_6(%arg0: i32) -> (i32, i32, i32, i32) {
    %c0_i32 = arith.constant 0 : i32
    %c0_i32_0 = arith.constant 0 : i32
    %c0_i32_1 = arith.constant 0 : i32
    %c0_i32_2 = arith.constant 0 : i32
    return %arg0, %c0_i32, %c0_i32_0, %c0_i32_1 : i32, i32, i32, i32
  }
  func.func @transform_7(%arg0: i32) -> (i32, i32, i32) {
    %c0_i32 = arith.constant 0 : i32
    %c0_i32_0 = arith.constant 0 : i32
    %c0_i32_1 = arith.constant 0 : i32
    return %arg0, %c0_i32, %c0_i32_0 : i32, i32, i32
  }
}

</mosaic_0001>

<llo_original>
// kernel: tpu_custom_call.1
$region0: #{tpu_custom_call.1}
  #allocation0 [shape = 'u32[]', space=smem, size = 0x4, offset = 0x4, fixed_abs, tag = 'smem constant byte address 0x4 - core index']
  #allocation1 [shape = 'u32[144,128]{1,0:T(1,128)}', space=vmem, size = 0x12000, scoped, tag = 'internal scratch']
  %s0 = inlined_call_operand.vmem [shape: f32[2,16,32], index: 0, kind: input, shape index: {}]
  %s1 = inlined_call_operand.vmem [shape: f32[2,8,32], index: 1, kind: input, shape index: {}]
  %s2 = inlined_call_operand.vmem [shape: f32[6,32,16], index: 2, kind: input, shape index: {}]
  %s3 = inlined_call_operand.vmem [shape: f32[6,1,16], index: 3, kind: input, shape index: {}]
  %s4 = inlined_call_operand.vmem [shape: f32[2,16,32], index: 4, kind: input, shape index: {}]
  %s5 = inlined_call_operand.vmem [shape: f32[1,32], index: 5, kind: input, shape index: {}]
  %s6 = inlined_call_operand.hbm [shape: f32[2,2,8,16], index: 6, kind: output, shape index: {0}]
  %s7 = inlined_call_operand.hbm [shape: f32[2,8,32], index: 7, kind: output, shape index: {1}]
  %8 = xla_tuple %s6, %s7
  %s9 = sld [smem:[#allocation0]]
  $region42: #{tpu_custom_call.1} parent=0
    _
  %s11 = ssub.s32 1, %s9
  %s12 = scalar_select 0, %s11, %s9
  $region1: #{tpu_custom_call.1} parent=0
    #allocation2 [shape = 'u8[16384]{0}', space=vmem, size = 0x4000, scoped, tag = 'output window, operand 0, single buffered']
    #allocation3 [shape = 's32[1]{0}', space=sflag, size = 0x4, scoped, tag = 'scoped memory for tpu_custom_call.1']
    #allocation4 [shape = 'u8[8192]{0}', space=vmem, size = 0x2000, scoped, tag = 'output window, operand 1, single buffered']
    #allocation5 [shape = 's32[1]{0}', space=sflag, size = 0x4, scoped, tag = 'scoped memory for tpu_custom_call.1']
    %13 = vsyncpa [#allocation3], 0
    %14 = vsyncpa [#allocation5], 0
    // Predicated region
    $region2: #{tpu_custom_call.1} parent=1 // pred_check
      _
    $region3: #{tpu_custom_call.1} parent=1 // pred_check_branch
      %16 = sbr.rel (0) target = $region5
    $region4: #{tpu_custom_call.1} parent=1 // pred_region
      _
    $region5: #{tpu_custom_call.1} parent=1 // pred_fallthru
      _
    // Predicated region
    $region6: #{tpu_custom_call.1} parent=1 // pred_check
      _
    $region7: #{tpu_custom_call.1} parent=1 // pred_check_branch
      %18 = sbr.rel (0) target = $region9
    $region8: #{tpu_custom_call.1} parent=1 // pred_region
      _
    $region9: #{tpu_custom_call.1} parent=1 // pred_fallthru
      _
    // Predicated region
    $region10: #{tpu_custom_call.1} parent=1 // pred_check
      _
    $region11: #{tpu_custom_call.1} parent=1 // pred_check_branch
      %20 = sbr.rel (0) target = $region13
    $region12: #{tpu_custom_call.1} parent=1 // pred_region
      _
    $region13: #{tpu_custom_call.1} parent=1 // pred_fallthru
      _
    // Predicated region
    $region14: #{tpu_custom_call.1} parent=1 // pred_check
      _
    $region15: #{tpu_custom_call.1} parent=1 // pred_check_branch
      %22 = sbr.rel (0) target = $region17
    $region16: #{tpu_custom_call.1} parent=1 // pred_region
      _
    $region17: #{tpu_custom_call.1} parent=1 // pred_fallthru
      _
    // Predicated region
    $region18: #{tpu_custom_call.1} parent=1 // pred_check
      _
    $region19: #{tpu_custom_call.1} parent=1 // pred_check_branch
      %24 = sbr.rel (0) target = $region21
    $region20: #{tpu_custom_call.1} parent=1 // pred_region
      _
    $region21: #{tpu_custom_call.1} parent=1 // pred_fallthru
      _
    // Predicated region
    $region22: #{tpu_custom_call.1} parent=1 // pred_check
      _
    $region23: #{tpu_custom_call.1} parent=1 // pred_check_branch
      %26 = sbr.rel (0) target = $region25
    $region24: #{tpu_custom_call.1} parent=1 // pred_region
      _
    $region25: #{tpu_custom_call.1} parent=1 // pred_fallthru
      _
    %v27 = vld [vmem:[%s5] sm:$0x1]
    %v28 = vld [vmem:[%s0] sm:$0xff]
    %v29 = vld [vmem:[%s0 + $0x8] sm:$0xff]
    %v30 = vld [vmem:[%s1] sm:$0xff]
    %v31 = vld [vmem:[%s2] sm:$0xff]
    %v32 = vld [vmem:[%s2 + $0x8] sm:$0xff]
    %v33 = vld [vmem:[%s2 + $0x10] sm:$0xff]
    %v34 = vld [vmem:[%s2 + $0x18] sm:$0xff]
    %v35 = vld [vmem:[%s3] sm:$0x1]
    %v37 = vlaneseq
    %v38 = vshrl.u32 %v37, 7
    %v39 = vsub.s32 0, %v38
    %v40 = vrot.slane %v35, %v39
    %vm42 = vcmask 261120
    %v44 = vsel %vm42, %v30, 0
    %46 = vmatprep.subr.mxu0 0.0
    %47 = vmatpush1.msra.mxu0 0.0
    %48 = vmatprep.subr.mxu0 0.0
    %49 = vmatpush1.msra.mxu0 0.0
    %50 = vmatprep.subr.mxu0 0.0
    %51 = vmatpush1.msra.mxu0 0.0
    %52 = vmatprep.subr.mxu0 0.0
    %53 = vmatpush1.msra.mxu0 0.0
    %54 = vmatprep.subr.mxu0 0.0
    %55 = vmatpush1.msra.mxu0 0.0
    %56 = vmatprep.subr.mxu0 0.0
    %57 = vmatpush1.msra.mxu0 0.0
    %58 = vmatprep.subr.mxu0 0.0
    %59 = vmatpush1.msra.mxu0 0.0
    %60 = vmatprep.subr.mxu0 0.0
    %61 = vmatpush1.msra.mxu0 0.0
    %62 = vmatprep.subr.mxu0 0.0
    %63 = vmatpush1.msra.mxu0 0.0
    %64 = vmatprep.subr.mxu0 0.0
    %65 = vmatpush1.msra.mxu0 0.0
    %66 = vmatprep.subr.mxu0 0.0
    %67 = vmatpush1.msra.mxu0 0.0
    %68 = vmatprep.subr.mxu0 0.0
    %69 = vmatpush1.msra.mxu0 0.0
    %70 = vmatprep.subr.mxu0 0.0
    %71 = vmatpush1.msra.mxu0 %v34
    %72 = vmatprep.subr.mxu0 0.0
    %73 = vmatpush1.msra.mxu0 %v33
    %74 = vmatprep.subr.mxu0 0.0
    %75 = vmatpush1.msra.mxu0 %v32
    %76 = vmatprep.subr.mxu0 0.0
    %77 = vmatpush1.msra.mxu0 %v31
    %78 = vmatprep.subr.mxu0 0.0
    %79 = vmatpush2.msra.mxu0 0.0
    %80 = vmatprep.subr.mxu0 0.0
    %81 = vmatpush2.msra.mxu0 0.0
    %82 = vmatprep.subr.mxu0 0.0
    %83 = vmatpush2.msra.mxu0 0.0
    %84 = vmatprep.subr.mxu0 0.0
    %85 = vmatpush2.msra.mxu0 0.0
    %86 = vmatprep.subr.mxu0 0.0
    %87 = vmatpush2.msra.mxu0 0.0
    %88 = vmatprep.subr.mxu0 0.0
    %89 = vmatpush2.msra.mxu0 0.0
    %90 = vmatprep.subr.mxu0 0.0
    %91 = vmatpush2.msra.mxu0 0.0
    %92 = vmatprep.subr.mxu0 0.0
    %93 = vmatpush2.msra.mxu0 0.0
    %94 = vmatprep.subr.mxu0 0.0
    %95 = vmatpush2.msra.mxu0 0.0
    %96 = vmatprep.subr.mxu0 0.0
    %97 = vmatpush2.msra.mxu0 0.0
    %98 = vmatprep.subr.mxu0 0.0
    %99 = vmatpush2.msra.mxu0 0.0
    %100 = vmatprep.subr.mxu0 0.0
    %101 = vmatpush2.msra.mxu0 0.0
    %102 = vmatprep.subr.mxu0 0.0
    %103 = vmatpush2.msra.mxu0 0.0
    %104 = vmatprep.subr.mxu0 0.0
    %105 = vmatpush2.msra.mxu0 0.0
    %106 = vmatprep.subr.mxu0 0.0
    %107 = vmatpush2.msra.mxu0 0.0
    %108 = vmatprep.subr.mxu0 0.0
    %109 = vmatpush2.msra.mxu0 0.0
    %110 = vmatprep.mubr.f32.mxu0 0.0
    %111 = vmatmul.mubr.f32.gmra.mxu0 %v44
    %v112 = vpop.f32.mrf.mxu0
    %v113 = vadd.f32 %v40, %v112
    %v114 = vpop.f32.mrf.mxu0
    %115 = vdwg.mxu0
    %s116 = scalar_lea.vmem %s2, 64
    %v117 = vld [vmem:[%s116] sm:$0xff]
    %v118 = vld [vmem:[%s116 + $0x8] sm:$0xff]
    %v119 = vld [vmem:[%s116 + $0x10] sm:$0xff]
    %v120 = vld [vmem:[%s116 + $0x18] sm:$0xff]
    %s121 = scalar_lea.vmem %s3, 2
    %v122 = vld [vmem:[%s121] sm:$0x1]
    %v124 = vlaneseq
    %v125 = vshrl.u32 %v124, 7
    %v126 = vsub.s32 0, %v125
    %v127 = vrot.slane %v122, %v126
    %v130 = vsel %vm42, %v28, 0
    %v133 = vsel %vm42, %v29, 0
    %135 = vmatprep.subr.mxu0 0.0
    %136 = vmatpush1.msra.mxu0 0.0
    %137 = vmatprep.subr.mxu0 0.0
    %138 = vmatpush1.msra.mxu0 0.0
    %139 = vmatprep.subr.mxu0 0.0
    %140 = vmatpush1.msra.mxu0 0.0
    %141 = vmatprep.subr.mxu0 0.0
    %142 = vmatpush1.msra.mxu0 0.0
    %143 = vmatprep.subr.mxu0 0.0
    %144 = vmatpush1.msra.mxu0 0.0
    %145 = vmatprep.subr.mxu0 0.0
    %146 = vmatpush1.msra.mxu0 0.0
    %147 = vmatprep.subr.mxu0 0.0
    %148 = vmatpush1.msra.mxu0 0.0
    %149 = vmatprep.subr.mxu0 0.0
    %150 = vmatpush1.msra.mxu0 0.0
    %151 = vmatprep.subr.mxu0 0.0
    %152 = vmatpush1.msra.mxu0 0.0
    %153 = vmatprep.subr.mxu0 0.0
    %154 = vmatpush1.msra.mxu0 0.0
    %155 = vmatprep.subr.mxu0 0.0
    %156 = vmatpush1.msra.mxu0 0.0
    %157 = vmatprep.subr.mxu0 0.0
    %158 = vmatpush1.msra.mxu0 0.0
    %159 = vmatprep.subr.mxu0 0.0
    %160 = vmatpush1.msra.mxu0 %v120
    %161 = vmatprep.subr.mxu0 0.0
    %162 = vmatpush1.msra.mxu0 %v119
    %163 = vmatprep.subr.mxu0 0.0
    %164 = vmatpush1.msra.mxu0 %v118
    %165 = vmatprep.subr.mxu0 0.0
    %166 = vmatpush1.msra.mxu0 %v117
    %167 = vmatprep.subr.mxu0 0.0
    %168 = vmatpush2.msra.mxu0 0.0
    %169 = vmatprep.subr.mxu0 0.0
    %170 = vmatpush2.msra.mxu0 0.0
    %171 = vmatprep.subr.mxu0 0.0
    %172 = vmatpush2.msra.mxu0 0.0
    %173 = vmatprep.subr.mxu0 0.0
    %174 = vmatpush2.msra.mxu0 0.0
    %175 = vmatprep.subr.mxu0 0.0
    %176 = vmatpush2.msra.mxu0 0.0
    %177 = vmatprep.subr.mxu0 0.0
    %178 = vmatpush2.msra.mxu0 0.0
    %179 = vmatprep.subr.mxu0 0.0
    %180 = vmatpush2.msra.mxu0 0.0
    %181 = vmatprep.subr.mxu0 0.0
    %182 = vmatpush2.msra.mxu0 0.0
    %183 = vmatprep.subr.mxu0 0.0
    %184 = vmatpush2.msra.mxu0 0.0
    %185 = vmatprep.subr.mxu0 0.0
    %186 = vmatpush2.msra.mxu0 0.0
    %187 = vmatprep.subr.mxu0 0.0
    %188 = vmatpush2.msra.mxu0 0.0
    %189 = vmatprep.subr.mxu0 0.0
    %190 = vmatpush2.msra.mxu0 0.0
    %191 = vmatprep.subr.mxu0 0.0
    %192 = vmatpush2.msra.mxu0 0.0
    %193 = vmatprep.subr.mxu0 0.0
    %194 = vmatpush2.msra.mxu0 0.0
    %195 = vmatprep.subr.mxu0 0.0
    %196 = vmatpush2.msra.mxu0 0.0
    %197 = vmatprep.subr.mxu0 0.0
    %198 = vmatpush2.msra.mxu0 0.0
    %199 = vmatprep.mubr.f32.mxu0 0.0
    %200 = vmatmul.mubr.f32.gmra.mxu0 %v130
    %v201 = vpop.f32.mrf.mxu0
    %v202 = vadd.f32 %v127, %v201
    %v203 = vpop.f32.mrf.mxu0
    %204 = vmatprep.mubr.f32.mxu0 0.0
    %205 = vmatmul.mubr.f32.gmra.mxu0 %v133
    %v206 = vpop.f32.mrf.mxu0
    %v207 = vadd.f32 %v127, %v206
    %v208 = vpop.f32.mrf.mxu0
    %209 = vdwg.mxu0
    %s210 = scalar_lea.vmem %s2, 128
    %v211 = vld [vmem:[%s210] sm:$0xff]
    %v212 = vld [vmem:[%s210 + $0x8] sm:$0xff]
    %v213 = vld [vmem:[%s210 + $0x10] sm:$0xff]
    %v214 = vld [vmem:[%s210 + $0x18] sm:$0xff]
    %s215 = scalar_lea.vmem %s3, 4
    %v216 = vld [vmem:[%s215] sm:$0x1]
    %v218 = vlaneseq
    %v219 = vshrl.u32 %v218, 7
    %v220 = vsub.s32 0, %v219
    %v221 = vrot.slane %v216, %v220
    %223 = vmatprep.subr.mxu0 0.0
    %224 = vmatpush1.msra.mxu0 0.0
    %225 = vmatprep.subr.mxu0 0.0
    %226 = vmatpush1.msra.mxu0 0.0
    %227 = vmatprep.subr.mxu0 0.0
    %228 = vmatpush1.msra.mxu0 0.0
    %229 = vmatprep.subr.mxu0 0.0
    %230 = vmatpush1.msra.mxu0 0.0
    %231 = vmatprep.subr.mxu0 0.0
    %232 = vmatpush1.msra.mxu0 0.0
    %233 = vmatprep.subr.mxu0 0.0
    %234 = vmatpush1.msra.mxu0 0.0
    %235 = vmatprep.subr.mxu0 0.0
    %236 = vmatpush1.msra.mxu0 0.0
    %237 = vmatprep.subr.mxu0 0.0
    %238 = vmatpush1.msra.mxu0 0.0
    %239 = vmatprep.subr.mxu0 0.0
    %240 = vmatpush1.msra.mxu0 0.0
    %241 = vmatprep.subr.mxu0 0.0
    %242 = vmatpush1.msra.mxu0 0.0
    %243 = vmatprep.subr.mxu0 0.0
    %244 = vmatpush1.msra.mxu0 0.0
    %245 = vmatprep.subr.mxu0 0.0
    %246 = vmatpush1.msra.mxu0 0.0
    %247 = vmatprep.subr.mxu0 0.0
    %248 = vmatpush1.msra.mxu0 %v214
    %249 = vmatprep.subr.mxu0 0.0
    %250 = vmatpush1.msra.mxu0 %v213
    %251 = vmatprep.subr.mxu0 0.0
    %252 = vmatpush1.msra.mxu0 %v212
    %253 = vmatprep.subr.mxu0 0.0
    %254 = vmatpush1.msra.mxu0 %v211
    %255 = vmatprep.subr.mxu0 0.0
    %256 = vmatpush2.msra.mxu0 0.0
    %257 = vmatprep.subr.mxu0 0.0
    %258 = vmatpush2.msra.mxu0 0.0
    %259 = vmatprep.subr.mxu0 0.0
    %260 = vmatpush2.msra.mxu0 0.0
    %261 = vmatprep.subr.mxu0 0.0
    %262 = vmatpush2.msra.mxu0 0.0
    %263 = vmatprep.subr.mxu0 0.0
    %264 = vmatpush2.msra.mxu0 0.0
    %265 = vmatprep.subr.mxu0 0.0
    %266 = vmatpush2.msra.mxu0 0.0
    %267 = vmatprep.subr.mxu0 0.0
    %268 = vmatpush2.msra.mxu0 0.0
    %269 = vmatprep.subr.mxu0 0.0
    %270 = vmatpush2.msra.mxu0 0.0
    %271 = vmatprep.subr.mxu0 0.0
    %272 = vmatpush2.msra.mxu0 0.0
    %273 = vmatprep.subr.mxu0 0.0
    %274 = vmatpush2.msra.mxu0 0.0
    %275 = vmatprep.subr.mxu0 0.0
    %276 = vmatpush2.msra.mxu0 0.0
    %277 = vmatprep.subr.mxu0 0.0
    %278 = vmatpush2.msra.mxu0 0.0
    %279 = vmatprep.subr.mxu0 0.0
    %280 = vmatpush2.msra.mxu0 0.0
    %281 = vmatprep.subr.mxu0 0.0
    %282 = vmatpush2.msra.mxu0 0.0
    %283 = vmatprep.subr.mxu0 0.0
    %284 = vmatpush2.msra.mxu0 0.0
    %285 = vmatprep.subr.mxu0 0.0
    %286 = vmatpush2.msra.mxu0 0.0
    %287 = vmatprep.mubr.f32.mxu0 0.0
    %288 = vmatmul.mubr.f32.gmra.mxu0 %v130
    %v289 = vpop.f32.mrf.mxu0
    %v290 = vadd.f32 %v221, %v289
    %v291 = vpop.f32.mrf.mxu0
    %292 = vmatprep.mubr.f32.mxu0 0.0
    %293 = vmatmul.mubr.f32.gmra.mxu0 %v133
    %v294 = vpop.f32.mrf.mxu0
    %v295 = vadd.f32 %v221, %v294
    %v296 = vpop.f32.mrf.mxu0
    %297 = vdwg.mxu0
    %vm298 = vcmask 130048
    %v300 = vsel %vm298, %v113, 0
    %v303 = vsel %vm298, %v202, 0
    %v306 = vsel %vm298, %v207, 0
    %308 = vmatprep.subr.mxu0 0.0
    %309 = vmatpush1.xpose.msra.mxu0 0.0
    %310 = vmatprep.subr.mxu0 0.0
    %311 = vmatpush1.xpose.msra.mxu0 0.0
    %312 = vmatprep.subr.mxu0 0.0
    %313 = vmatpush1.xpose.msra.mxu0 0.0
    %314 = vmatprep.subr.mxu0 0.0
    %315 = vmatpush1.xpose.msra.mxu0 0.0
    %316 = vmatprep.subr.mxu0 0.0
    %317 = vmatpush1.xpose.msra.mxu0 0.0
    %318 = vmatprep.subr.mxu0 0.0
    %319 = vmatpush1.xpose.msra.mxu0 0.0
    %320 = vmatprep.subr.mxu0 0.0
    %321 = vmatpush1.xpose.msra.mxu0 0.0
    %322 = vmatprep.subr.mxu0 0.0
    %323 = vmatpush1.xpose.msra.mxu0 0.0
    %324 = vmatprep.subr.mxu0 0.0
    %325 = vmatpush1.xpose.msra.mxu0 0.0
    %326 = vmatprep.subr.mxu0 0.0
    %327 = vmatpush1.xpose.msra.mxu0 0.0
    %328 = vmatprep.subr.mxu0 0.0
    %329 = vmatpush1.xpose.msra.mxu0 0.0
    %330 = vmatprep.subr.mxu0 0.0
    %331 = vmatpush1.xpose.msra.mxu0 0.0
    %332 = vmatprep.subr.mxu0 0.0
    %333 = vmatpush1.xpose.msra.mxu0 0.0
    %334 = vmatprep.subr.mxu0 0.0
    %335 = vmatpush1.xpose.msra.mxu0 0.0
    %336 = vmatprep.subr.mxu0 0.0
    %337 = vmatpush1.xpose.msra.mxu0 %v306
    %338 = vmatprep.subr.mxu0 0.0
    %339 = vmatpush1.xpose.msra.mxu0 %v303
    %340 = vmatprep.subr.mxu0 0.0
    %341 = vmatpush2.xpose.msra.mxu0 0.0
    %342 = vmatprep.subr.mxu0 0.0
    %343 = vmatpush2.xpose.msra.mxu0 0.0
    %344 = vmatprep.subr.mxu0 0.0
    %345 = vmatpush2.xpose.msra.mxu0 0.0
    %346 = vmatprep.subr.mxu0 0.0
    %347 = vmatpush2.xpose.msra.mxu0 0.0
    %348 = vmatprep.subr.mxu0 0.0
    %349 = vmatpush2.xpose.msra.mxu0 0.0
    %350 = vmatprep.subr.mxu0 0.0
    %351 = vmatpush2.xpose.msra.mxu0 0.0
    %352 = vmatprep.subr.mxu0 0.0
    %353 = vmatpush2.xpose.msra.mxu0 0.0
    %354 = vmatprep.subr.mxu0 0.0
    %355 = vmatpush2.xpose.msra.mxu0 0.0
    %356 = vmatprep.subr.mxu0 0.0
    %357 = vmatpush2.xpose.msra.mxu0 0.0
    %358 = vmatprep.subr.mxu0 0.0
    %359 = vmatpush2.xpose.msra.mxu0 0.0
    %360 = vmatprep.subr.mxu0 0.0
    %361 = vmatpush2.xpose.msra.mxu0 0.0
    %362 = vmatprep.subr.mxu0 0.0
    %363 = vmatpush2.xpose.msra.mxu0 0.0
    %364 = vmatprep.subr.mxu0 0.0
    %365 = vmatpush2.xpose.msra.mxu0 0.0
    %366 = vmatprep.subr.mxu0 0.0
    %367 = vmatpush2.xpose.msra.mxu0 0.0
    %368 = vmatprep.subr.mxu0 0.0
    %369 = vmatpush2.xpose.msra.mxu0 0.0
    %370 = vmatprep.subr.mxu0 0.0
    %371 = vmatpush2.xpose.msra.mxu0 0.0
    %372 = vmatprep.mubr.f32.mxu0 0.0
    %373 = vmatmul.mubr.f32.gmra.mxu0 %v300
    %v374 = vpop.f32.mrf.mxu0
    %v375 = vadd.f32 0.0, %v374
    %v376 = vpop.f32.mrf.mxu0
    %377 = vdwg.mxu0
    %v378 = vmul.f32 %v375, 0.25
    %v379 = vsel %vm298, %v378, -inf
    %380 = vmax.xlane.f32.xlu0 %v379
    %v381 = vpop.xlane.xlu0 %380
    %v382 = vsub.f32 %v378, %v381
    %v383 = vmul.f32 %v382, 1.442695
    %v384 = vpow.pop %v383
    %v385 = vsel %vm298, %v384, 0.0
    %386 = vadd.xlane.f32.xlu0 %v385
    %v387 = vpop.xlane.xlu0 %386
    %v388 = vrcp.pop %v387
    %v389 = vmul.f32 %v384, %v388
    %390 = vst.msk [vmem:[#allocation2] sm:$0xff] %vm298, %v389
    %v392 = vsel %vm298, %v389, 0
    %394 = vmatprep.subr.mxu0 0.0
    %395 = vmatpush1.msra.mxu0 0.0
    %396 = vmatprep.subr.mxu0 0.0
    %397 = vmatpush1.msra.mxu0 0.0
    %398 = vmatprep.subr.mxu0 0.0
    %399 = vmatpush1.msra.mxu0 0.0
    %400 = vmatprep.subr.mxu0 0.0
    %401 = vmatpush1.msra.mxu0 0.0
    %402 = vmatprep.subr.mxu0 0.0
    %403 = vmatpush1.msra.mxu0 0.0
    %404 = vmatprep.subr.mxu0 0.0
    %405 = vmatpush1.msra.mxu0 0.0
    %406 = vmatprep.subr.mxu0 0.0
    %407 = vmatpush1.msra.mxu0 0.0
    %408 = vmatprep.subr.mxu0 0.0
    %409 = vmatpush1.msra.mxu0 0.0
    %410 = vmatprep.subr.mxu0 0.0
    %411 = vmatpush1.msra.mxu0 0.0
    %412 = vmatprep.subr.mxu0 0.0
    %413 = vmatpush1.msra.mxu0 0.0
    %414 = vmatprep.subr.mxu0 0.0
    %415 = vmatpush1.msra.mxu0 0.0
    %416 = vmatprep.subr.mxu0 0.0
    %417 = vmatpush1.msra.mxu0 0.0
    %418 = vmatprep.subr.mxu0 0.0
    %419 = vmatpush1.msra.mxu0 0.0
    %420 = vmatprep.subr.mxu0 0.0
    %421 = vmatpush1.msra.mxu0 0.0
    %422 = vmatprep.subr.mxu0 0.0
    %423 = vmatpush1.msra.mxu0 %v295
    %424 = vmatprep.subr.mxu0 0.0
    %425 = vmatpush1.msra.mxu0 %v290
    %426 = vmatprep.subr.mxu0 0.0
    %427 = vmatpush2.msra.mxu0 0.0
    %428 = vmatprep.subr.mxu0 0.0
    %429 = vmatpush2.msra.mxu0 0.0
    %430 = vmatprep.subr.mxu0 0.0
    %431 = vmatpush2.msra.mxu0 0.0
    %432 = vmatprep.subr.mxu0 0.0
    %433 = vmatpush2.msra.mxu0 0.0
    %434 = vmatprep.subr.mxu0 0.0
    %435 = vmatpush2.msra.mxu0 0.0
    %436 = vmatprep.subr.mxu0 0.0
    %437 = vmatpush2.msra.mxu0 0.0
    %438 = vmatprep.subr.mxu0 0.0
    %439 = vmatpush2.msra.mxu0 0.0
    %440 = vmatprep.subr.mxu0 0.0
    %441 = vmatpush2.msra.mxu0 0.0
    %442 = vmatprep.subr.mxu0 0.0
    %443 = vmatpush2.msra.mxu0 0.0
    %444 = vmatprep.subr.mxu0 0.0
    %445 = vmatpush2.msra.mxu0 0.0
    %446 = vmatprep.subr.mxu0 0.0
    %447 = vmatpush2.msra.mxu0 0.0
    %448 = vmatprep.subr.mxu0 0.0
    %449 = vmatpush2.msra.mxu0 0.0
    %450 = vmatprep.subr.mxu0 0.0
    %451 = vmatpush2.msra.mxu0 0.0
    %452 = vmatprep.subr.mxu0 0.0
    %453 = vmatpush2.msra.mxu0 0.0
    %454 = vmatprep.subr.mxu0 0.0
    %455 = vmatpush2.msra.mxu0 0.0
    %456 = vmatprep.subr.mxu0 0.0
    %457 = vmatpush2.msra.mxu0 0.0
    %458 = vmatprep.mubr.f32.mxu0 0.0
    %459 = vmatmul.mubr.f32.gmra.mxu0 %v392
    %v460 = vpop.f32.mrf.mxu0
    %v461 = vadd.f32 0.0, %v460
    %v462 = vpop.f32.mrf.mxu0
    %463 = vdwg.mxu0
    %v464 = vld [vmem:[%s4] sm:$0xff]
    %v465 = vld [vmem:[%s4 + $0x8] sm:$0xff]
    %s466 = scalar_lea.vmem %s2, 32
    %v467 = vld [vmem:[%s466] sm:$0xff]
    %v468 = vld [vmem:[%s466 + $0x8] sm:$0xff]
    %v469 = vld [vmem:[%s466 + $0x10] sm:$0xff]
    %v470 = vld [vmem:[%s466 + $0x18] sm:$0xff]
    %s471 = scalar_lea.vmem %s3, 1
    %v472 = vld [vmem:[%s471] sm:$0x1]
    %v474 = vlaneseq
    %v475 = vshrl.u32 %v474, 7
    %v476 = vsub.s32 0, %v475
    %v477 = vrot.slane %v472, %v476
    %479 = vmatprep.subr.mxu0 0.0
    %480 = vmatpush1.msra.mxu0 0.0
    %481 = vmatprep.subr.mxu0 0.0
    %482 = vmatpush1.msra.mxu0 0.0
    %483 = vmatprep.subr.mxu0 0.0
    %484 = vmatpush1.msra.mxu0 0.0
    %485 = vmatprep.subr.mxu0 0.0
    %486 = vmatpush1.msra.mxu0 0.0
    %487 = vmatprep.subr.mxu0 0.0
    %488 = vmatpush1.msra.mxu0 0.0
    %489 = vmatprep.subr.mxu0 0.0
    %490 = vmatpush1.msra.mxu0 0.0
    %491 = vmatprep.subr.mxu0 0.0
    %492 = vmatpush1.msra.mxu0 0.0
    %493 = vmatprep.subr.mxu0 0.0
    %494 = vmatpush1.msra.mxu0 0.0
    %495 = vmatprep.subr.mxu0 0.0
    %496 = vmatpush1.msra.mxu0 0.0
    %497 = vmatprep.subr.mxu0 0.0
    %498 = vmatpush1.msra.mxu0 0.0
    %499 = vmatprep.subr.mxu0 0.0
    %500 = vmatpush1.msra.mxu0 0.0
    %501 = vmatprep.subr.mxu0 0.0
    %502 = vmatpush1.msra.mxu0 0.0
    %503 = vmatprep.subr.mxu0 0.0
    %504 = vmatpush1.msra.mxu0 %v470
    %505 = vmatprep.subr.mxu0 0.0
    %506 = vmatpush1.msra.mxu0 %v469
    %507 = vmatprep.subr.mxu0 0.0
    %508 = vmatpush1.msra.mxu0 %v468
    %509 = vmatprep.subr.mxu0 0.0
    %510 = vmatpush1.msra.mxu0 %v467
    %511 = vmatprep.subr.mxu0 0.0
    %512 = vmatpush2.msra.mxu0 0.0
    %513 = vmatprep.subr.mxu0 0.0
    %514 = vmatpush2.msra.mxu0 0.0
    %515 = vmatprep.subr.mxu0 0.0
    %516 = vmatpush2.msra.mxu0 0.0
    %517 = vmatprep.subr.mxu0 0.0
    %518 = vmatpush2.msra.mxu0 0.0
    %519 = vmatprep.subr.mxu0 0.0
    %520 = vmatpush2.msra.mxu0 0.0
    %521 = vmatprep.subr.mxu0 0.0
    %522 = vmatpush2.msra.mxu0 0.0
    %523 = vmatprep.subr.mxu0 0.0
    %524 = vmatpush2.msra.mxu0 0.0
    %525 = vmatprep.subr.mxu0 0.0
    %526 = vmatpush2.msra.mxu0 0.0
    %527 = vmatprep.subr.mxu0 0.0
    %528 = vmatpush2.msra.mxu0 0.0
    %529 = vmatprep.subr.mxu0 0.0
    %530 = vmatpush2.msra.mxu0 0.0
    %531 = vmatprep.subr.mxu0 0.0
    %532 = vmatpush2.msra.mxu0 0.0
    %533 = vmatprep.subr.mxu0 0.0
    %534 = vmatpush2.msra.mxu0 0.0
    %535 = vmatprep.subr.mxu0 0.0
    %536 = vmatpush2.msra.mxu0 0.0
    %537 = vmatprep.subr.mxu0 0.0
    %538 = vmatpush2.msra.mxu0 0.0
    %539 = vmatprep.subr.mxu0 0.0
    %540 = vmatpush2.msra.mxu0 0.0
    %541 = vmatprep.subr.mxu0 0.0
    %542 = vmatpush2.msra.mxu0 0.0
    %543 = vmatprep.mubr.f32.mxu0 0.0
    %544 = vmatmul.mubr.f32.gmra.mxu0 %v44
    %v545 = vpop.f32.mrf.mxu0
    %v546 = vadd.f32 %v477, %v545
    %v547 = vpop.f32.mrf.mxu0
    %548 = vdwg.mxu0
    %s549 = scalar_lea.vmem %s2, 96
    %v550 = vld [vmem:[%s549] sm:$0xff]
    %v551 = vld [vmem:[%s549 + $0x8] sm:$0xff]
    %v552 = vld [vmem:[%s549 + $0x10] sm:$0xff]
    %v553 = vld [vmem:[%s549 + $0x18] sm:$0xff]
    %s554 = scalar_lea.vmem %s3, 3
    %v555 = vld [vmem:[%s554] sm:$0x1]
    %v557 = vlaneseq
    %v558 = vshrl.u32 %v557, 7
    %v559 = vsub.s32 0, %v558
    %v560 = vrot.slane %v555, %v559
    %562 = vmatprep.subr.mxu0 0.0
    %563 = vmatpush1.msra.mxu0 0.0
    %564 = vmatprep.subr.mxu0 0.0
    %565 = vmatpush1.msra.mxu0 0.0
    %566 = vmatprep.subr.mxu0 0.0
    %567 = vmatpush1.msra.mxu0 0.0
    %568 = vmatprep.subr.mxu0 0.0
    %569 = vmatpush1.msra.mxu0 0.0
    %570 = vmatprep.subr.mxu0 0.0
    %571 = vmatpush1.msra.mxu0 0.0
    %572 = vmatprep.subr.mxu0 0.0
    %573 = vmatpush1.msra.mxu0 0.0
    %574 = vmatprep.subr.mxu0 0.0
    %575 = vmatpush1.msra.mxu0 0.0
    %576 = vmatprep.subr.mxu0 0.0
    %577 = vmatpush1.msra.mxu0 0.0
    %578 = vmatprep.subr.mxu0 0.0
    %579 = vmatpush1.msra.mxu0 0.0
    %580 = vmatprep.subr.mxu0 0.0
    %581 = vmatpush1.msra.mxu0 0.0
    %582 = vmatprep.subr.mxu0 0.0
    %583 = vmatpush1.msra.mxu0 0.0
    %584 = vmatprep.subr.mxu0 0.0
    %585 = vmatpush1.msra.mxu0 0.0
    %586 = vmatprep.subr.mxu0 0.0
    %587 = vmatpush1.msra.mxu0 %v553
    %588 = vmatprep.subr.mxu0 0.0
    %589 = vmatpush1.msra.mxu0 %v552
    %590 = vmatprep.subr.mxu0 0.0
    %591 = vmatpush1.msra.mxu0 %v551
    %592 = vmatprep.subr.mxu0 0.0
    %593 = vmatpush1.msra.mxu0 %v550
    %594 = vmatprep.subr.mxu0 0.0
    %595 = vmatpush2.msra.mxu0 0.0
    %596 = vmatprep.subr.mxu0 0.0
    %597 = vmatpush2.msra.mxu0 0.0
    %598 = vmatprep.subr.mxu0 0.0
    %599 = vmatpush2.msra.mxu0 0.0
    %600 = vmatprep.subr.mxu0 0.0
    %601 = vmatpush2.msra.mxu0 0.0
    %602 = vmatprep.subr.mxu0 0.0
    %603 = vmatpush2.msra.mxu0 0.0
    %604 = vmatprep.subr.mxu0 0.0
    %605 = vmatpush2.msra.mxu0 0.0
    %606 = vmatprep.subr.mxu0 0.0
    %607 = vmatpush2.msra.mxu0 0.0
    %608 = vmatprep.subr.mxu0 0.0
    %609 = vmatpush2.msra.mxu0 0.0
    %610 = vmatprep.subr.mxu0 0.0
    %611 = vmatpush2.msra.mxu0 0.0
    %612 = vmatprep.subr.mxu0 0.0
    %613 = vmatpush2.msra.mxu0 0.0
    %614 = vmatprep.subr.mxu0 0.0
    %615 = vmatpush2.msra.mxu0 0.0
    %616 = vmatprep.subr.mxu0 0.0
    %617 = vmatpush2.msra.mxu0 0.0
    %618 = vmatprep.subr.mxu0 0.0
    %619 = vmatpush2.msra.mxu0 0.0
    %620 = vmatprep.subr.mxu0 0.0
    %621 = vmatpush2.msra.mxu0 0.0
    %622 = vmatprep.subr.mxu0 0.0
    %623 = vmatpush2.msra.mxu0 0.0
    %624 = vmatprep.subr.mxu0 0.0
    %625 = vmatpush2.msra.mxu0 0.0
    %626 = vmatprep.mubr.f32.mxu0 0.0
    %627 = vmatmul.mubr.f32.gmra.mxu0 %v130
    %v628 = vpop.f32.mrf.mxu0
    %v629 = vadd.f32 %v560, %v628
    %v630 = vpop.f32.mrf.mxu0
    %631 = vmatprep.mubr.f32.mxu0 0.0
    %632 = vmatmul.mubr.f32.gmra.mxu0 %v133
    %v633 = vpop.f32.mrf.mxu0
    %v634 = vadd.f32 %v560, %v633
    %v635 = vpop.f32.mrf.mxu0
    %636 = vdwg.mxu0
    %s637 = scalar_lea.vmem %s2, 160
    %v638 = vld [vmem:[%s637] sm:$0xff]
    %v639 = vld [vmem:[%s637 + $0x8] sm:$0xff]
    %v640 = vld [vmem:[%s637 + $0x10] sm:$0xff]
    %v641 = vld [vmem:[%s637 + $0x18] sm:$0xff]
    %s642 = scalar_lea.vmem %s3, 5
    %v643 = vld [vmem:[%s642] sm:$0x1]
    %v645 = vlaneseq
    %v646 = vshrl.u32 %v645, 7
    %v647 = vsub.s32 0, %v646
    %v648 = vrot.slane %v643, %v647
    %650 = vmatprep.subr.mxu0 0.0
    %651 = vmatpush1.msra.mxu0 0.0
    %652 = vmatprep.subr.mxu0 0.0
    %653 = vmatpush1.msra.mxu0 0.0
    %654 = vmatprep.subr.mxu0 0.0
    %655 = vmatpush1.msra.mxu0 0.0
    %656 = vmatprep.subr.mxu0 0.0
    %657 = vmatpush1.msra.mxu0 0.0
    %658 = vmatprep.subr.mxu0 0.0
    %659 = vmatpush1.msra.mxu0 0.0
    %660 = vmatprep.subr.mxu0 0.0
    %661 = vmatpush1.msra.mxu0 0.0
    %662 = vmatprep.subr.mxu0 0.0
    %663 = vmatpush1.msra.mxu0 0.0
    %664 = vmatprep.subr.mxu0 0.0
    %665 = vmatpush1.msra.mxu0 0.0
    %666 = vmatprep.subr.mxu0 0.0
    %667 = vmatpush1.msra.mxu0 0.0
    %668 = vmatprep.subr.mxu0 0.0
    %669 = vmatpush1.msra.mxu0 0.0
    %670 = vmatprep.subr.mxu0 0.0
    %671 = vmatpush1.msra.mxu0 0.0
    %672 = vmatprep.subr.mxu0 0.0
    %673 = vmatpush1.msra.mxu0 0.0
    %674 = vmatprep.subr.mxu0 0.0
    %675 = vmatpush1.msra.mxu0 %v641
    %676 = vmatprep.subr.mxu0 0.0
    %677 = vmatpush1.msra.mxu0 %v640
    %678 = vmatprep.subr.mxu0 0.0
    %679 = vmatpush1.msra.mxu0 %v639
    %680 = vmatprep.subr.mxu0 0.0
    %681 = vmatpush1.msra.mxu0 %v638
    %682 = vmatprep.subr.mxu0 0.0
    %683 = vmatpush2.msra.mxu0 0.0
    %684 = vmatprep.subr.mxu0 0.0
    %685 = vmatpush2.msra.mxu0 0.0
    %686 = vmatprep.subr.mxu0 0.0
    %687 = vmatpush2.msra.mxu0 0.0
    %688 = vmatprep.subr.mxu0 0.0
    %689 = vmatpush2.msra.mxu0 0.0
    %690 = vmatprep.subr.mxu0 0.0
    %691 = vmatpush2.msra.mxu0 0.0
    %692 = vmatprep.subr.mxu0 0.0
    %693 = vmatpush2.msra.mxu0 0.0
    %694 = vmatprep.subr.mxu0 0.0
    %695 = vmatpush2.msra.mxu0 0.0
    %696 = vmatprep.subr.mxu0 0.0
    %697 = vmatpush2.msra.mxu0 0.0
    %698 = vmatprep.subr.mxu0 0.0
    %699 = vmatpush2.msra.mxu0 0.0
    %700 = vmatprep.subr.mxu0 0.0
    %701 = vmatpush2.msra.mxu0 0.0
    %702 = vmatprep.subr.mxu0 0.0
    %703 = vmatpush2.msra.mxu0 0.0
    %704 = vmatprep.subr.mxu0 0.0
    %705 = vmatpush2.msra.mxu0 0.0
    %706 = vmatprep.subr.mxu0 0.0
    %707 = vmatpush2.msra.mxu0 0.0
    %708 = vmatprep.subr.mxu0 0.0
    %709 = vmatpush2.msra.mxu0 0.0
    %710 = vmatprep.subr.mxu0 0.0
    %711 = vmatpush2.msra.mxu0 0.0
    %712 = vmatprep.subr.mxu0 0.0
    %713 = vmatpush2.msra.mxu0 0.0
    %714 = vmatprep.mubr.f32.mxu0 0.0
    %715 = vmatmul.mubr.f32.gmra.mxu0 %v130
    %v716 = vpop.f32.mrf.mxu0
    %v717 = vadd.f32 %v648, %v716
    %v718 = vpop.f32.mrf.mxu0
    %719 = vmatprep.mubr.f32.mxu0 0.0
    %720 = vmatmul.mubr.f32.gmra.mxu0 %v133
    %v721 = vpop.f32.mrf.mxu0
    %v722 = vadd.f32 %v648, %v721
    %v723 = vpop.f32.mrf.mxu0
    %724 = vdwg.mxu0
    %v726 = vsel %vm298, %v546, 0
    %v729 = vsel %vm298, %v629, 0
    %v732 = vsel %vm298, %v634, 0
    %734 = vmatprep.subr.mxu0 0.0
    %735 = vmatpush1.xpose.msra.mxu0 0.0
    %736 = vmatprep.subr.mxu0 0.0
    %737 = vmatpush1.xpose.msra.mxu0 0.0
    %738 = vmatprep.subr.mxu0 0.0
    %739 = vmatpush1.xpose.msra.mxu0 0.0
    %740 = vmatprep.subr.mxu0 0.0
    %741 = vmatpush1.xpose.msra.mxu0 0.0
    %742 = vmatprep.subr.mxu0 0.0
    %743 = vmatpush1.xpose.msra.mxu0 0.0
    %744 = vmatprep.subr.mxu0 0.0
    %745 = vmatpush1.xpose.msra.mxu0 0.0
    %746 = vmatprep.subr.mxu0 0.0
    %747 = vmatpush1.xpose.msra.mxu0 0.0
    %748 = vmatprep.subr.mxu0 0.0
    %749 = vmatpush1.xpose.msra.mxu0 0.0
    %750 = vmatprep.subr.mxu0 0.0
    %751 = vmatpush1.xpose.msra.mxu0 0.0
    %752 = vmatprep.subr.mxu0 0.0
    %753 = vmatpush1.xpose.msra.mxu0 0.0
    %754 = vmatprep.subr.mxu0 0.0
    %755 = vmatpush1.xpose.msra.mxu0 0.0
    %756 = vmatprep.subr.mxu0 0.0
    %757 = vmatpush1.xpose.msra.mxu0 0.0
    %758 = vmatprep.subr.mxu0 0.0
    %759 = vmatpush1.xpose.msra.mxu0 0.0
    %760 = vmatprep.subr.mxu0 0.0
    %761 = vmatpush1.xpose.msra.mxu0 0.0
    %762 = vmatprep.subr.mxu0 0.0
    %763 = vmatpush1.xpose.msra.mxu0 %v732
    %764 = vmatprep.subr.mxu0 0.0
    %765 = vmatpush1.xpose.msra.mxu0 %v729
    %766 = vmatprep.subr.mxu0 0.0
    %767 = vmatpush2.xpose.msra.mxu0 0.0
    %768 = vmatprep.subr.mxu0 0.0
    %769 = vmatpush2.xpose.msra.mxu0 0.0
    %770 = vmatprep.subr.mxu0 0.0
    %771 = vmatpush2.xpose.msra.mxu0 0.0
    %772 = vmatprep.subr.mxu0 0.0
    %773 = vmatpush2.xpose.msra.mxu0 0.0
    %774 = vmatprep.subr.mxu0 0.0
    %775 = vmatpush2.xpose.msra.mxu0 0.0
    %776 = vmatprep.subr.mxu0 0.0
    %777 = vmatpush2.xpose.msra.mxu0 0.0
    %778 = vmatprep.subr.mxu0 0.0
    %779 = vmatpush2.xpose.msra.mxu0 0.0
    %780 = vmatprep.subr.mxu0 0.0
    %781 = vmatpush2.xpose.msra.mxu0 0.0
    %782 = vmatprep.subr.mxu0 0.0
    %783 = vmatpush2.xpose.msra.mxu0 0.0
    %784 = vmatprep.subr.mxu0 0.0
    %785 = vmatpush2.xpose.msra.mxu0 0.0
    %786 = vmatprep.subr.mxu0 0.0
    %787 = vmatpush2.xpose.msra.mxu0 0.0
    %788 = vmatprep.subr.mxu0 0.0
    %789 = vmatpush2.xpose.msra.mxu0 0.0
    %790 = vmatprep.subr.mxu0 0.0
    %791 = vmatpush2.xpose.msra.mxu0 0.0
    %792 = vmatprep.subr.mxu0 0.0
    %793 = vmatpush2.xpose.msra.mxu0 0.0
    %794 = vmatprep.subr.mxu0 0.0
    %795 = vmatpush2.xpose.msra.mxu0 0.0
    %796 = vmatprep.subr.mxu0 0.0
    %797 = vmatpush2.xpose.msra.mxu0 0.0
    %798 = vmatprep.mubr.f32.mxu0 0.0
    %799 = vmatmul.mubr.f32.gmra.mxu0 %v726
    %v800 = vpop.f32.mrf.mxu0
    %v801 = vadd.f32 0.0, %v800
    %v802 = vpop.f32.mrf.mxu0
    %803 = vdwg.mxu0
    %v804 = vmul.f32 %v801, 0.25
    %v805 = vsel %vm298, %v804, -inf
    %806 = vmax.xlane.f32.xlu0 %v805
    %v807 = vpop.xlane.xlu0 %806
    %v808 = vsub.f32 %v804, %v807
    %v809 = vmul.f32 %v808, 1.442695
    %v810 = vpow.pop %v809
    %v811 = vsel %vm298, %v810, 0.0
    %812 = vadd.xlane.f32.xlu0 %v811
    %v813 = vpop.xlane.xlu0 %812
    %v814 = vrcp.pop %v813
    %v815 = vmul.f32 %v810, %v814
    %s816 = scalar_lea.vmem [#allocation2], 8
    %817 = vst.msk [vmem:[%s816] sm:$0xff] %vm298, %v815
    %v819 = vsel %vm298, %v815, 0
    %821 = vmatprep.subr.mxu0 0.0
    %822 = vmatpush1.msra.mxu0 0.0
    %823 = vmatprep.subr.mxu0 0.0
    %824 = vmatpush1.msra.mxu0 0.0
    %825 = vmatprep.subr.mxu0 0.0
    %826 = vmatpush1.msra.mxu0 0.0
    %827 = vmatprep.subr.mxu0 0.0
    %828 = vmatpush1.msra.mxu0 0.0
    %829 = vmatprep.subr.mxu0 0.0
    %830 = vmatpush1.msra.mxu0 0.0
    %831 = vmatprep.subr.mxu0 0.0
    %832 = vmatpush1.msra.mxu0 0.0
    %833 = vmatprep.subr.mxu0 0.0
    %834 = vmatpush1.msra.mxu0 0.0
    %835 = vmatprep.subr.mxu0 0.0
    %836 = vmatpush1.msra.mxu0 0.0
    %837 = vmatprep.subr.mxu0 0.0
    %838 = vmatpush1.msra.mxu0 0.0
    %839 = vmatprep.subr.mxu0 0.0
    %840 = vmatpush1.msra.mxu0 0.0
    %841 = vmatprep.subr.mxu0 0.0
    %842 = vmatpush1.msra.mxu0 0.0
    %843 = vmatprep.subr.mxu0 0.0
    %844 = vmatpush1.msra.mxu0 0.0
    %845 = vmatprep.subr.mxu0 0.0
    %846 = vmatpush1.msra.mxu0 0.0
    %847 = vmatprep.subr.mxu0 0.0
    %848 = vmatpush1.msra.mxu0 0.0
    %849 = vmatprep.subr.mxu0 0.0
    %850 = vmatpush1.msra.mxu0 %v722
    %851 = vmatprep.subr.mxu0 0.0
    %852 = vmatpush1.msra.mxu0 %v717
    %853 = vmatprep.subr.mxu0 0.0
    %854 = vmatpush2.msra.mxu0 0.0
    %855 = vmatprep.subr.mxu0 0.0
    %856 = vmatpush2.msra.mxu0 0.0
    %857 = vmatprep.subr.mxu0 0.0
    %858 = vmatpush2.msra.mxu0 0.0
    %859 = vmatprep.subr.mxu0 0.0
    %860 = vmatpush2.msra.mxu0 0.0
    %861 = vmatprep.subr.mxu0 0.0
    %862 = vmatpush2.msra.mxu0 0.0
    %863 = vmatprep.subr.mxu0 0.0
    %864 = vmatpush2.msra.mxu0 0.0
    %865 = vmatprep.subr.mxu0 0.0
    %866 = vmatpush2.msra.mxu0 0.0
    %867 = vmatprep.subr.mxu0 0.0
    %868 = vmatpush2.msra.mxu0 0.0
    %869 = vmatprep.subr.mxu0 0.0
    %870 = vmatpush2.msra.mxu0 0.0
    %871 = vmatprep.subr.mxu0 0.0
    %872 = vmatpush2.msra.mxu0 0.0
    %873 = vmatprep.subr.mxu0 0.0
    %874 = vmatpush2.msra.mxu0 0.0
    %875 = vmatprep.subr.mxu0 0.0
    %876 = vmatpush2.msra.mxu0 0.0
    %877 = vmatprep.subr.mxu0 0.0
    %878 = vmatpush2.msra.mxu0 0.0
    %879 = vmatprep.subr.mxu0 0.0
    %880 = vmatpush2.msra.mxu0 0.0
    %881 = vmatprep.subr.mxu0 0.0
    %882 = vmatpush2.msra.mxu0 0.0
    %883 = vmatprep.subr.mxu0 0.0
    %884 = vmatpush2.msra.mxu0 0.0
    %885 = vmatprep.mubr.f32.mxu0 0.0
    %886 = vmatmul.mubr.f32.gmra.mxu0 %v819
    %v887 = vpop.f32.mrf.mxu0
    %v888 = vadd.f32 0.0, %v887
    %v889 = vpop.f32.mrf.mxu0
    %890 = vdwg.mxu0
    %s891 = scalar_lea.vmem %s4, 16
    %v892 = vld [vmem:[%s891] sm:$0xff]
    %v893 = vld [vmem:[%s891 + $0x8] sm:$0xff]
    %v895 = vsel %vm298, %v888, 0
    %897 = vmatprep.subr.mxu0 0.0
    %898 = vmatpush1.msra.mxu0 0.0
    %899 = vmatprep.subr.mxu0 0.0
    %900 = vmatpush1.msra.mxu0 0.0
    %901 = vmatprep.subr.mxu0 0.0
    %902 = vmatpush1.msra.mxu0 0.0
    %903 = vmatprep.subr.mxu0 0.0
    %904 = vmatpush1.msra.mxu0 0.0
    %905 = vmatprep.subr.mxu0 0.0
    %906 = vmatpush1.msra.mxu0 0.0
    %907 = vmatprep.subr.mxu0 0.0
    %908 = vmatpush1.msra.mxu0 0.0
    %909 = vmatprep.subr.mxu0 0.0
    %910 = vmatpush1.msra.mxu0 0.0
    %911 = vmatprep.subr.mxu0 0.0
    %912 = vmatpush1.msra.mxu0 0.0
    %913 = vmatprep.subr.mxu0 0.0
    %914 = vmatpush1.msra.mxu0 0.0
    %915 = vmatprep.subr.mxu0 0.0
    %916 = vmatpush1.msra.mxu0 0.0
    %917 = vmatprep.subr.mxu0 0.0
    %918 = vmatpush1.msra.mxu0 0.0
    %919 = vmatprep.subr.mxu0 0.0
    %920 = vmatpush1.msra.mxu0 0.0
    %921 = vmatprep.subr.mxu0 0.0
    %922 = vmatpush1.msra.mxu0 0.0
    %923 = vmatprep.subr.mxu0 0.0
    %924 = vmatpush1.msra.mxu0 0.0
    %925 = vmatprep.subr.mxu0 0.0
    %926 = vmatpush1.msra.mxu0 %v893
    %927 = vmatprep.subr.mxu0 0.0
    %928 = vmatpush1.msra.mxu0 %v892
    %929 = vmatprep.subr.mxu0 0.0
    %930 = vmatpush2.msra.mxu0 0.0
    %931 = vmatprep.subr.mxu0 0.0
    %932 = vmatpush2.msra.mxu0 0.0
    %933 = vmatprep.subr.mxu0 0.0
    %934 = vmatpush2.msra.mxu0 0.0
    %935 = vmatprep.subr.mxu0 0.0
    %936 = vmatpush2.msra.mxu0 0.0
    %937 = vmatprep.subr.mxu0 0.0
    %938 = vmatpush2.msra.mxu0 0.0
    %939 = vmatprep.subr.mxu0 0.0
    %940 = vmatpush2.msra.mxu0 0.0
    %941 = vmatprep.subr.mxu0 0.0
    %942 = vmatpush2.msra.mxu0 0.0
    %943 = vmatprep.subr.mxu0 0.0
    %944 = vmatpush2.msra.mxu0 0.0
    %945 = vmatprep.subr.mxu0 0.0
    %946 = vmatpush2.msra.mxu0 0.0
    %947 = vmatprep.subr.mxu0 0.0
    %948 = vmatpush2.msra.mxu0 0.0
    %949 = vmatprep.subr.mxu0 0.0
    %950 = vmatpush2.msra.mxu0 0.0
    %951 = vmatprep.subr.mxu0 0.0
    %952 = vmatpush2.msra.mxu0 0.0
    %953 = vmatprep.subr.mxu0 0.0
    %954 = vmatpush2.msra.mxu0 0.0
    %955 = vmatprep.subr.mxu0 0.0
    %956 = vmatpush2.msra.mxu0 0.0
    %957 = vmatprep.subr.mxu0 0.0
    %958 = vmatpush2.msra.mxu0 0.0
    %959 = vmatprep.subr.mxu0 0.0
    %960 = vmatpush2.msra.mxu0 0.0
    %961 = vmatprep.mubr.f32.mxu0 0.0
    %962 = vmatmul.mubr.f32.gmra.mxu0 %v895
    %v963 = vpop.f32.mrf.mxu0
    %v964 = vadd.f32 0.0, %v963
    %v965 = vpop.f32.mrf.mxu0
    %966 = vdwg.mxu0
    %v968 = vsel %vm298, %v461, 0
    %970 = vmatprep.subr.mxu0 0.0
    %971 = vmatpush1.msra.mxu0 0.0
    %972 = vmatprep.subr.mxu0 0.0
    %973 = vmatpush1.msra.mxu0 0.0
    %974 = vmatprep.subr.mxu0 0.0
    %975 = vmatpush1.msra.mxu0 0.0
    %976 = vmatprep.subr.mxu0 0.0
    %977 = vmatpush1.msra.mxu0 0.0
    %978 = vmatprep.subr.mxu0 0.0
    %979 = vmatpush1.msra.mxu0 0.0
    %980 = vmatprep.subr.mxu0 0.0
    %981 = vmatpush1.msra.mxu0 0.0
    %982 = vmatprep.subr.mxu0 0.0
    %983 = vmatpush1.msra.mxu0 0.0
    %984 = vmatprep.subr.mxu0 0.0
    %985 = vmatpush1.msra.mxu0 0.0
    %986 = vmatprep.subr.mxu0 0.0
    %987 = vmatpush1.msra.mxu0 0.0
    %988 = vmatprep.subr.mxu0 0.0
    %989 = vmatpush1.msra.mxu0 0.0
    %990 = vmatprep.subr.mxu0 0.0
    %991 = vmatpush1.msra.mxu0 0.0
    %992 = vmatprep.subr.mxu0 0.0
    %993 = vmatpush1.msra.mxu0 0.0
    %994 = vmatprep.subr.mxu0 0.0
    %995 = vmatpush1.msra.mxu0 0.0
    %996 = vmatprep.subr.mxu0 0.0
    %997 = vmatpush1.msra.mxu0 0.0
    %998 = vmatprep.subr.mxu0 0.0
    %999 = vmatpush1.msra.mxu0 %v465
    %1000 = vmatprep.subr.mxu0 0.0
    %1001 = vmatpush1.msra.mxu0 %v464
    %1002 = vmatprep.subr.mxu0 0.0
    %1003 = vmatpush2.msra.mxu0 0.0
    %1004 = vmatprep.subr.mxu0 0.0
    %1005 = vmatpush2.msra.mxu0 0.0
    %1006 = vmatprep.subr.mxu0 0.0
    %1007 = vmatpush2.msra.mxu0 0.0
    %1008 = vmatprep.subr.mxu0 0.0
    %1009 = vmatpush2.msra.mxu0 0.0
    %1010 = vmatprep.subr.mxu0 0.0
    %1011 = vmatpush2.msra.mxu0 0.0
    %1012 = vmatprep.subr.mxu0 0.0
    %1013 = vmatpush2.msra.mxu0 0.0
    %1014 = vmatprep.subr.mxu0 0.0
    %1015 = vmatpush2.msra.mxu0 0.0
    %1016 = vmatprep.subr.mxu0 0.0
    %1017 = vmatpush2.msra.mxu0 0.0
    %1018 = vmatprep.subr.mxu0 0.0
    %1019 = vmatpush2.msra.mxu0 0.0
    %1020 = vmatprep.subr.mxu0 0.0
    %1021 = vmatpush2.msra.mxu0 0.0
    %1022 = vmatprep.subr.mxu0 0.0
    %1023 = vmatpush2.msra.mxu0 0.0
    %1024 = vmatprep.subr.mxu0 0.0
    %1025 = vmatpush2.msra.mxu0 0.0
    %1026 = vmatprep.subr.mxu0 0.0
    %1027 = vmatpush2.msra.mxu0 0.0
    %1028 = vmatprep.subr.mxu0 0.0
    %1029 = vmatpush2.msra.mxu0 0.0
    %1030 = vmatprep.subr.mxu0 0.0
    %1031 = vmatpush2.msra.mxu0 0.0
    %1032 = vmatprep.subr.mxu0 0.0
    %1033 = vmatpush2.msra.mxu0 0.0
    %1034 = vmatprep.mubr.f32.mxu0 0.0
    %1035 = vmatmul.mubr.f32.gmra.mxu0 %v968
    %v1036 = vpop.f32.mrf.mxu0
    %v1037 = vadd.f32 %v964, %v1036
    %v1038 = vpop.f32.mrf.mxu0
    %1039 = vdwg.mxu0
    %v1041 = vlaneseq
    %v1042 = vshrl.u32 %v1041, 7
    %v1043 = vsub.s32 0, %v1042
    %v1044 = vrot.slane %v27, %v1043
    %v1046 = vadd.f32 %v1037, %v1044
    %1047 = vst.msk [vmem:[#allocation4] sm:$0xff] %vm42, %v1046
    %s1048 = scalar_lea.vmem %s0, 16
    %v1049 = vld [vmem:[%s1048] sm:$0xff]
    %v1050 = vld [vmem:[%s1048 + $0x8] sm:$0xff]
    %s1051 = scalar_lea.vmem %s1, 8
    %v1052 = vld [vmem:[%s1051] sm:$0xff]
    %v1053 = vld [vmem:[%s2] sm:$0xff]
    %v1054 = vld [vmem:[%s2 + $0x8] sm:$0xff]
    %v1055 = vld [vmem:[%s2 + $0x10] sm:$0xff]
    %v1056 = vld [vmem:[%s2 + $0x18] sm:$0xff]
    %v1057 = vld [vmem:[%s3] sm:$0x1]
    %v1059 = vlaneseq
    %v1060 = vshrl.u32 %v1059, 7
    %v1061 = vsub.s32 0, %v1060
    %v1062 = vrot.slane %v1057, %v1061
    %v1065 = vsel %vm42, %v1052, 0
    %1067 = vmatprep.subr.mxu0 0.0
    %1068 = vmatpush1.msra.mxu0 0.0
    %1069 = vmatprep.subr.mxu0 0.0
    %1070 = vmatpush1.msra.mxu0 0.0
    %1071 = vmatprep.subr.mxu0 0.0
    %1072 = vmatpush1.msra.mxu0 0.0
    %1073 = vmatprep.subr.mxu0 0.0
    %1074 = vmatpush1.msra.mxu0 0.0
    %1075 = vmatprep.subr.mxu0 0.0
    %1076 = vmatpush1.msra.mxu0 0.0
    %1077 = vmatprep.subr.mxu0 0.0
    %1078 = vmatpush1.msra.mxu0 0.0
    %1079 = vmatprep.subr.mxu0 0.0
    %1080 = vmatpush1.msra.mxu0 0.0
    %1081 = vmatprep.subr.mxu0 0.0
    %1082 = vmatpush1.msra.mxu0 0.0
    %1083 = vmatprep.subr.mxu0 0.0
    %1084 = vmatpush1.msra.mxu0 0.0
    %1085 = vmatprep.subr.mxu0 0.0
    %1086 = vmatpush1.msra.mxu0 0.0
    %1087 = vmatprep.subr.mxu0 0.0
    %1088 = vmatpush1.msra.mxu0 0.0
    %1089 = vmatprep.subr.mxu0 0.0
    %1090 = vmatpush1.msra.mxu0 0.0
    %1091 = vmatprep.subr.mxu0 0.0
    %1092 = vmatpush1.msra.mxu0 %v1056
    %1093 = vmatprep.subr.mxu0 0.0
    %1094 = vmatpush1.msra.mxu0 %v1055
    %1095 = vmatprep.subr.mxu0 0.0
    %1096 = vmatpush1.msra.mxu0 %v1054
    %1097 = vmatprep.subr.mxu0 0.0
    %1098 = vmatpush1.msra.mxu0 %v1053
    %1099 = vmatprep.subr.mxu0 0.0
    %1100 = vmatpush2.msra.mxu0 0.0
    %1101 = vmatprep.subr.mxu0 0.0
    %1102 = vmatpush2.msra.mxu0 0.0
    %1103 = vmatprep.subr.mxu0 0.0
    %1104 = vmatpush2.msra.mxu0 0.0
    %1105 = vmatprep.subr.mxu0 0.0
    %1106 = vmatpush2.msra.mxu0 0.0
    %1107 = vmatprep.subr.mxu0 0.0
    %1108 = vmatpush2.msra.mxu0 0.0
    %1109 = vmatprep.subr.mxu0 0.0
    %1110 = vmatpush2.msra.mxu0 0.0
    %1111 = vmatprep.subr.mxu0 0.0
    %1112 = vmatpush2.msra.mxu0 0.0
    %1113 = vmatprep.subr.mxu0 0.0
    %1114 = vmatpush2.msra.mxu0 0.0
    %1115 = vmatprep.subr.mxu0 0.0
    %1116 = vmatpush2.msra.mxu0 0.0
    %1117 = vmatprep.subr.mxu0 0.0
    %1118 = vmatpush2.msra.mxu0 0.0
    %1119 = vmatprep.subr.mxu0 0.0
    %1120 = vmatpush2.msra.mxu0 0.0
    %1121 = vmatprep.subr.mxu0 0.0
    %1122 = vmatpush2.msra.mxu0 0.0
    %1123 = vmatprep.subr.mxu0 0.0
    %1124 = vmatpush2.msra.mxu0 0.0
    %1125 = vmatprep.subr.mxu0 0.0
    %1126 = vmatpush2.msra.mxu0 0.0
    %1127 = vmatprep.subr.mxu0 0.0
    %1128 = vmatpush2.msra.mxu0 0.0
    %1129 = vmatprep.subr.mxu0 0.0
    %1130 = vmatpush2.msra.mxu0 0.0
    %1131 = vmatprep.mubr.f32.mxu0 0.0
    %1132 = vmatmul.mubr.f32.gmra.mxu0 %v1065
    %v1133 = vpop.f32.mrf.mxu0
    %v1134 = vadd.f32 %v1062, %v1133
    %v1135 = vpop.f32.mrf.mxu0
    %1136 = vdwg.mxu0
    %v1137 = vld [vmem:[%s116] sm:$0xff]
    %v1138 = vld [vmem:[%s116 + $0x8] sm:$0xff]
    %v1139 = vld [vmem:[%s116 + $0x10] sm:$0xff]
    %v1140 = vld [vmem:[%s116 + $0x18] sm:$0xff]
    %v1141 = vld [vmem:[%s121] sm:$0x1]
    %v1143 = vlaneseq
    %v1144 = vshrl.u32 %v1143, 7
    %v1145 = vsub.s32 0, %v1144
    %v1146 = vrot.slane %v1141, %v1145
    %v1149 = vsel %vm42, %v1049, 0
    %v1152 = vsel %vm42, %v1050, 0
    %1154 = vmatprep.subr.mxu0 0.0
    %1155 = vmatpush1.msra.mxu0 0.0
    %1156 = vmatprep.subr.mxu0 0.0
    %1157 = vmatpush1.msra.mxu0 0.0
    %1158 = vmatprep.subr.mxu0 0.0
    %1159 = vmatpush1.msra.mxu0 0.0
    %1160 = vmatprep.subr.mxu0 0.0
    %1161 = vmatpush1.msra.mxu0 0.0
    %1162 = vmatprep.subr.mxu0 0.0
    %1163 = vmatpush1.msra.mxu0 0.0
    %1164 = vmatprep.subr.mxu0 0.0
    %1165 = vmatpush1.msra.mxu0 0.0
    %1166 = vmatprep.subr.mxu0 0.0
    %1167 = vmatpush1.msra.mxu0 0.0
    %1168 = vmatprep.subr.mxu0 0.0
    %1169 = vmatpush1.msra.mxu0 0.0
    %1170 = vmatprep.subr.mxu0 0.0
    %1171 = vmatpush1.msra.mxu0 0.0
    %1172 = vmatprep.subr.mxu0 0.0
    %1173 = vmatpush1.msra.mxu0 0.0
    %1174 = vmatprep.subr.mxu0 0.0
    %1175 = vmatpush1.msra.mxu0 0.0
    %1176 = vmatprep.subr.mxu0 0.0
    %1177 = vmatpush1.msra.mxu0 0.0
    %1178 = vmatprep.subr.mxu0 0.0
    %1179 = vmatpush1.msra.mxu0 %v1140
    %1180 = vmatprep.subr.mxu0 0.0
    %1181 = vmatpush1.msra.mxu0 %v1139
    %1182 = vmatprep.subr.mxu0 0.0
    %1183 = vmatpush1.msra.mxu0 %v1138
    %1184 = vmatprep.subr.mxu0 0.0
    %1185 = vmatpush1.msra.mxu0 %v1137
    %1186 = vmatprep.subr.mxu0 0.0
    %1187 = vmatpush2.msra.mxu0 0.0
    %1188 = vmatprep.subr.mxu0 0.0
    %1189 = vmatpush2.msra.mxu0 0.0
    %1190 = vmatprep.subr.mxu0 0.0
    %1191 = vmatpush2.msra.mxu0 0.0
    %1192 = vmatprep.subr.mxu0 0.0
    %1193 = vmatpush2.msra.mxu0 0.0
    %1194 = vmatprep.subr.mxu0 0.0
    %1195 = vmatpush2.msra.mxu0 0.0
    %1196 = vmatprep.subr.mxu0 0.0
    %1197 = vmatpush2.msra.mxu0 0.0
    %1198 = vmatprep.subr.mxu0 0.0
    %1199 = vmatpush2.msra.mxu0 0.0
    %1200 = vmatprep.subr.mxu0 0.0
    %1201 = vmatpush2.msra.mxu0 0.0
    %1202 = vmatprep.subr.mxu0 0.0
    %1203 = vmatpush2.msra.mxu0 0.0
    %1204 = vmatprep.subr.mxu0 0.0
    %1205 = vmatpush2.msra.mxu0 0.0
    %1206 = vmatprep.subr.mxu0 0.0
    %1207 = vmatpush2.msra.mxu0 0.0
    %1208 = vmatprep.subr.mxu0 0.0
    %1209 = vmatpush2.msra.mxu0 0.0
    %1210 = vmatprep.subr.mxu0 0.0
    %1211 = vmatpush2.msra.mxu0 0.0
    %1212 = vmatprep.subr.mxu0 0.0
    %1213 = vmatpush2.msra.mxu0 0.0
    %1214 = vmatprep.subr.mxu0 0.0
    %1215 = vmatpush2.msra.mxu0 0.0
    %1216 = vmatprep.subr.mxu0 0.0
    %1217 = vmatpush2.msra.mxu0 0.0
    %1218 = vmatprep.mubr.f32.mxu0 0.0
    %1219 = vmatmul.mubr.f32.gmra.mxu0 %v1149
    %v1220 = vpop.f32.mrf.mxu0
    %v1221 = vadd.f32 %v1146, %v1220
    %v1222 = vpop.f32.mrf.mxu0
    %1223 = vmatprep.mubr.f32.mxu0 0.0
    %1224 = vmatmul.mubr.f32.gmra.mxu0 %v1152
    %v1225 = vpop.f32.mrf.mxu0
    %v1226 = vadd.f32 %v1146, %v1225
    %v1227 = vpop.f32.mrf.mxu0
    %1228 = vdwg.mxu0
    %v1229 = vld [vmem:[%s210] sm:$0xff]
    %v1230 = vld [vmem:[%s210 + $0x8] sm:$0xff]
    %v1231 = vld [vmem:[%s210 + $0x10] sm:$0xff]
    %v1232 = vld [vmem:[%s210 + $0x18] sm:$0xff]
    %v1233 = vld [vmem:[%s215] sm:$0x1]
    %v1235 = vlaneseq
    %v1236 = vshrl.u32 %v1235, 7
    %v1237 = vsub.s32 0, %v1236
    %v1238 = vrot.slane %v1233, %v1237
    %1240 = vmatprep.subr.mxu0 0.0
    %1241 = vmatpush1.msra.mxu0 0.0
    %1242 = vmatprep.subr.mxu0 0.0
    %1243 = vmatpush1.msra.mxu0 0.0
    %1244 = vmatprep.subr.mxu0 0.0
    %1245 = vmatpush1.msra.mxu0 0.0
    %1246 = vmatprep.subr.mxu0 0.0
    %1247 = vmatpush1.msra.mxu0 0.0
    %1248 = vmatprep.subr.mxu0 0.0
    %1249 = vmatpush1.msra.mxu0 0.0
    %1250 = vmatprep.subr.mxu0 0.0
    %1251 = vmatpush1.msra.mxu0 0.0
    %1252 = vmatprep.subr.mxu0 0.0
    %1253 = vmatpush1.msra.mxu0 0.0
    %1254 = vmatprep.subr.mxu0 0.0
    %1255 = vmatpush1.msra.mxu0 0.0
    %1256 = vmatprep.subr.mxu0 0.0
    %1257 = vmatpush1.msra.mxu0 0.0
    %1258 = vmatprep.subr.mxu0 0.0
    %1259 = vmatpush1.msra.mxu0 0.0
    %1260 = vmatprep.subr.mxu0 0.0
    %1261 = vmatpush1.msra.mxu0 0.0
    %1262 = vmatprep.subr.mxu0 0.0
    %1263 = vmatpush1.msra.mxu0 0.0
    %1264 = vmatprep.subr.mxu0 0.0
    %1265 = vmatpush1.msra.mxu0 %v1232
    %1266 = vmatprep.subr.mxu0 0.0
    %1267 = vmatpush1.msra.mxu0 %v1231
    %1268 = vmatprep.subr.mxu0 0.0
    %1269 = vmatpush1.msra.mxu0 %v1230
    %1270 = vmatprep.subr.mxu0 0.0
    %1271 = vmatpush1.msra.mxu0 %v1229
    %1272 = vmatprep.subr.mxu0 0.0
    %1273 = vmatpush2.msra.mxu0 0.0
    %1274 = vmatprep.subr.mxu0 0.0
    %1275 = vmatpush2.msra.mxu0 0.0
    %1276 = vmatprep.subr.mxu0 0.0
    %1277 = vmatpush2.msra.mxu0 0.0
    %1278 = vmatprep.subr.mxu0 0.0
    %1279 = vmatpush2.msra.mxu0 0.0
    %1280 = vmatprep.subr.mxu0 0.0
    %1281 = vmatpush2.msra.mxu0 0.0
    %1282 = vmatprep.subr.mxu0 0.0
    %1283 = vmatpush2.msra.mxu0 0.0
    %1284 = vmatprep.subr.mxu0 0.0
    %1285 = vmatpush2.msra.mxu0 0.0
    %1286 = vmatprep.subr.mxu0 0.0
    %1287 = vmatpush2.msra.mxu0 0.0
    %1288 = vmatprep.subr.mxu0 0.0
    %1289 = vmatpush2.msra.mxu0 0.0
    %1290 = vmatprep.subr.mxu0 0.0
    %1291 = vmatpush2.msra.mxu0 0.0
    %1292 = vmatprep.subr.mxu0 0.0
    %1293 = vmatpush2.msra.mxu0 0.0
    %1294 = vmatprep.subr.mxu0 0.0
    %1295 = vmatpush2.msra.mxu0 0.0
    %1296 = vmatprep.subr.mxu0 0.0
    %1297 = vmatpush2.msra.mxu0 0.0
    %1298 = vmatprep.subr.mxu0 0.0
    %1299 = vmatpush2.msra.mxu0 0.0
    %1300 = vmatprep.subr.mxu0 0.0
    %1301 = vmatpush2.msra.mxu0 0.0
    %1302 = vmatprep.subr.mxu0 0.0
    %1303 = vmatpush2.msra.mxu0 0.0
    %1304 = vmatprep.mubr.f32.mxu0 0.0
    %1305 = vmatmul.mubr.f32.gmra.mxu0 %v1149
    %v1306 = vpop.f32.mrf.mxu0
    %v1307 = vadd.f32 %v1238, %v1306
    %v1308 = vpop.f32.mrf.mxu0
    %1309 = vmatprep.mubr.f32.mxu0 0.0
    %1310 = vmatmul.mubr.f32.gmra.mxu0 %v1152
    %v1311 = vpop.f32.mrf.mxu0
    %v1312 = vadd.f32 %v1238, %v1311
    %v1313 = vpop.f32.mrf.mxu0
    %1314 = vdwg.mxu0
    %v1316 = vsel %vm298, %v1134, 0
    %v1319 = vsel %vm298, %v1221, 0
    %v1322 = vsel %vm298, %v1226, 0
    %1324 = vmatprep.subr.mxu0 0.0
    %1325 = vmatpush1.xpose.msra.mxu0 0.0
    %1326 = vmatprep.subr.mxu0 0.0
    %1327 = vmatpush1.xpose.msra.mxu0 0.0
    %1328 = vmatprep.subr.mxu0 0.0
    %1329 = vmatpush1.xpose.msra.mxu0 0.0
    %1330 = vmatprep.subr.mxu0 0.0
    %1331 = vmatpush1.xpose.msra.mxu0 0.0
    %1332 = vmatprep.subr.mxu0 0.0
    %1333 = vmatpush1.xpose.msra.mxu0 0.0
    %1334 = vmatprep.subr.mxu0 0.0
    %1335 = vmatpush1.xpose.msra.mxu0 0.0
    %1336 = vmatprep.subr.mxu0 0.0
    %1337 = vmatpush1.xpose.msra.mxu0 0.0
    %1338 = vmatprep.subr.mxu0 0.0
    %1339 = vmatpush1.xpose.msra.mxu0 0.0
    %1340 = vmatprep.subr.mxu0 0.0
    %1341 = vmatpush1.xpose.msra.mxu0 0.0
    %1342 = vmatprep.subr.mxu0 0.0
    %1343 = vmatpush1.xpose.msra.mxu0 0.0
    %1344 = vmatprep.subr.mxu0 0.0
    %1345 = vmatpush1.xpose.msra.mxu0 0.0
    %1346 = vmatprep.subr.mxu0 0.0
    %1347 = vmatpush1.xpose.msra.mxu0 0.0
    %1348 = vmatprep.subr.mxu0 0.0
    %1349 = vmatpush1.xpose.msra.mxu0 0.0
    %1350 = vmatprep.subr.mxu0 0.0
    %1351 = vmatpush1.xpose.msra.mxu0 0.0
    %1352 = vmatprep.subr.mxu0 0.0
    %1353 = vmatpush1.xpose.msra.mxu0 %v1322
    %1354 = vmatprep.subr.mxu0 0.0
    %1355 = vmatpush1.xpose.msra.mxu0 %v1319
    %1356 = vmatprep.subr.mxu0 0.0
    %1357 = vmatpush2.xpose.msra.mxu0 0.0
    %1358 = vmatprep.subr.mxu0 0.0
    %1359 = vmatpush2.xpose.msra.mxu0 0.0
    %1360 = vmatprep.subr.mxu0 0.0
    %1361 = vmatpush2.xpose.msra.mxu0 0.0
    %1362 = vmatprep.subr.mxu0 0.0
    %1363 = vmatpush2.xpose.msra.mxu0 0.0
    %1364 = vmatprep.subr.mxu0 0.0
    %1365 = vmatpush2.xpose.msra.mxu0 0.0
    %1366 = vmatprep.subr.mxu0 0.0
    %1367 = vmatpush2.xpose.msra.mxu0 0.0
    %1368 = vmatprep.subr.mxu0 0.0
    %1369 = vmatpush2.xpose.msra.mxu0 0.0
    %1370 = vmatprep.subr.mxu0 0.0
    %1371 = vmatpush2.xpose.msra.mxu0 0.0
    %1372 = vmatprep.subr.mxu0 0.0
    %1373 = vmatpush2.xpose.msra.mxu0 0.0
    %1374 = vmatprep.subr.mxu0 0.0
    %1375 = vmatpush2.xpose.msra.mxu0 0.0
    %1376 = vmatprep.subr.mxu0 0.0
    %1377 = vmatpush2.xpose.msra.mxu0 0.0
    %1378 = vmatprep.subr.mxu0 0.0
    %1379 = vmatpush2.xpose.msra.mxu0 0.0
    %1380 = vmatprep.subr.mxu0 0.0
    %1381 = vmatpush2.xpose.msra.mxu0 0.0
    %1382 = vmatprep.subr.mxu0 0.0
    %1383 = vmatpush2.xpose.msra.mxu0 0.0
    %1384 = vmatprep.subr.mxu0 0.0
    %1385 = vmatpush2.xpose.msra.mxu0 0.0
    %1386 = vmatprep.subr.mxu0 0.0
    %1387 = vmatpush2.xpose.msra.mxu0 0.0
    %1388 = vmatprep.mubr.f32.mxu0 0.0
    %1389 = vmatmul.mubr.f32.gmra.mxu0 %v1316
    %v1390 = vpop.f32.mrf.mxu0
    %v1391 = vadd.f32 0.0, %v1390
    %v1392 = vpop.f32.mrf.mxu0
    %1393 = vdwg.mxu0
    %v1394 = vmul.f32 %v1391, 0.25
    %v1395 = vsel %vm298, %v1394, -inf
    %1396 = vmax.xlane.f32.xlu0 %v1395
    %v1397 = vpop.xlane.xlu0 %1396
    %v1398 = vsub.f32 %v1394, %v1397
    %v1399 = vmul.f32 %v1398, 1.442695
    %v1400 = vpow.pop %v1399
    %v1401 = vsel %vm298, %v1400, 0.0
    %1402 = vadd.xlane.f32.xlu0 %v1401
    %v1403 = vpop.xlane.xlu0 %1402
    %v1404 = vrcp.pop %v1403
    %v1405 = vmul.f32 %v1400, %v1404
    %s1406 = scalar_lea.vmem [#allocation2], 16
    %1407 = vst.msk [vmem:[%s1406] sm:$0xff] %vm298, %v1405
    %v1409 = vsel %vm298, %v1405, 0
    %1411 = vmatprep.subr.mxu0 0.0
    %1412 = vmatpush1.msra.mxu0 0.0
    %1413 = vmatprep.subr.mxu0 0.0
    %1414 = vmatpush1.msra.mxu0 0.0
    %1415 = vmatprep.subr.mxu0 0.0
    %1416 = vmatpush1.msra.mxu0 0.0
    %1417 = vmatprep.subr.mxu0 0.0
    %1418 = vmatpush1.msra.mxu0 0.0
    %1419 = vmatprep.subr.mxu0 0.0
    %1420 = vmatpush1.msra.mxu0 0.0
    %1421 = vmatprep.subr.mxu0 0.0
    %1422 = vmatpush1.msra.mxu0 0.0
    %1423 = vmatprep.subr.mxu0 0.0
    %1424 = vmatpush1.msra.mxu0 0.0
    %1425 = vmatprep.subr.mxu0 0.0
    %1426 = vmatpush1.msra.mxu0 0.0
    %1427 = vmatprep.subr.mxu0 0.0
    %1428 = vmatpush1.msra.mxu0 0.0
    %1429 = vmatprep.subr.mxu0 0.0
    %1430 = vmatpush1.msra.mxu0 0.0
    %1431 = vmatprep.subr.mxu0 0.0
    %1432 = vmatpush1.msra.mxu0 0.0
    %1433 = vmatprep.subr.mxu0 0.0
    %1434 = vmatpush1.msra.mxu0 0.0
    %1435 = vmatprep.subr.mxu0 0.0
    %1436 = vmatpush1.msra.mxu0 0.0
    %1437 = vmatprep.subr.mxu0 0.0
    %1438 = vmatpush1.msra.mxu0 0.0
    %1439 = vmatprep.subr.mxu0 0.0
    %1440 = vmatpush1.msra.mxu0 %v1312
    %1441 = vmatprep.subr.mxu0 0.0
    %1442 = vmatpush1.msra.mxu0 %v1307
    %1443 = vmatprep.subr.mxu0 0.0
    %1444 = vmatpush2.msra.mxu0 0.0
    %1445 = vmatprep.subr.mxu0 0.0
    %1446 = vmatpush2.msra.mxu0 0.0
    %1447 = vmatprep.subr.mxu0 0.0
    %1448 = vmatpush2.msra.mxu0 0.0
    %1449 = vmatprep.subr.mxu0 0.0
    %1450 = vmatpush2.msra.mxu0 0.0
    %1451 = vmatprep.subr.mxu0 0.0
    %1452 = vmatpush2.msra.mxu0 0.0
    %1453 = vmatprep.subr.mxu0 0.0
    %1454 = vmatpush2.msra.mxu0 0.0
    %1455 = vmatprep.subr.mxu0 0.0
    %1456 = vmatpush2.msra.mxu0 0.0
    %1457 = vmatprep.subr.mxu0 0.0
    %1458 = vmatpush2.msra.mxu0 0.0
    %1459 = vmatprep.subr.mxu0 0.0
    %1460 = vmatpush2.msra.mxu0 0.0
    %1461 = vmatprep.subr.mxu0 0.0
    %1462 = vmatpush2.msra.mxu0 0.0
    %1463 = vmatprep.subr.mxu0 0.0
    %1464 = vmatpush2.msra.mxu0 0.0
    %1465 = vmatprep.subr.mxu0 0.0
    %1466 = vmatpush2.msra.mxu0 0.0
    %1467 = vmatprep.subr.mxu0 0.0
    %1468 = vmatpush2.msra.mxu0 0.0
    %1469 = vmatprep.subr.mxu0 0.0
    %1470 = vmatpush2.msra.mxu0 0.0
    %1471 = vmatprep.subr.mxu0 0.0
    %1472 = vmatpush2.msra.mxu0 0.0
    %1473 = vmatprep.subr.mxu0 0.0
    %1474 = vmatpush2.msra.mxu0 0.0
    %1475 = vmatprep.mubr.f32.mxu0 0.0
    %1476 = vmatmul.mubr.f32.gmra.mxu0 %v1409
    %v1477 = vpop.f32.mrf.mxu0
    %v1478 = vadd.f32 0.0, %v1477
    %v1479 = vpop.f32.mrf.mxu0
    %1480 = vdwg.mxu0
    %v1481 = vld [vmem:[%s4] sm:$0xff]
    %v1482 = vld [vmem:[%s4 + $0x8] sm:$0xff]
    %v1483 = vld [vmem:[%s466] sm:$0xff]
    %v1484 = vld [vmem:[%s466 + $0x8] sm:$0xff]
    %v1485 = vld [vmem:[%s466 + $0x10] sm:$0xff]
    %v1486 = vld [vmem:[%s466 + $0x18] sm:$0xff]
    %v1487 = vld [vmem:[%s471] sm:$0x1]
    %v1489 = vlaneseq
    %v1490 = vshrl.u32 %v1489, 7
    %v1491 = vsub.s32 0, %v1490
    %v1492 = vrot.slane %v1487, %v1491
    %1494 = vmatprep.subr.mxu0 0.0
    %1495 = vmatpush1.msra.mxu0 0.0
    %1496 = vmatprep.subr.mxu0 0.0
    %1497 = vmatpush1.msra.mxu0 0.0
    %1498 = vmatprep.subr.mxu0 0.0
    %1499 = vmatpush1.msra.mxu0 0.0
    %1500 = vmatprep.subr.mxu0 0.0
    %1501 = vmatpush1.msra.mxu0 0.0
    %1502 = vmatprep.subr.mxu0 0.0
    %1503 = vmatpush1.msra.mxu0 0.0
    %1504 = vmatprep.subr.mxu0 0.0
    %1505 = vmatpush1.msra.mxu0 0.0
    %1506 = vmatprep.subr.mxu0 0.0
    %1507 = vmatpush1.msra.mxu0 0.0
    %1508 = vmatprep.subr.mxu0 0.0
    %1509 = vmatpush1.msra.mxu0 0.0
    %1510 = vmatprep.subr.mxu0 0.0
    %1511 = vmatpush1.msra.mxu0 0.0
    %1512 = vmatprep.subr.mxu0 0.0
    %1513 = vmatpush1.msra.mxu0 0.0
    %1514 = vmatprep.subr.mxu0 0.0
    %1515 = vmatpush1.msra.mxu0 0.0
    %1516 = vmatprep.subr.mxu0 0.0
    %1517 = vmatpush1.msra.mxu0 0.0
    %1518 = vmatprep.subr.mxu0 0.0
    %1519 = vmatpush1.msra.mxu0 %v1486
    %1520 = vmatprep.subr.mxu0 0.0
    %1521 = vmatpush1.msra.mxu0 %v1485
    %1522 = vmatprep.subr.mxu0 0.0
    %1523 = vmatpush1.msra.mxu0 %v1484
    %1524 = vmatprep.subr.mxu0 0.0
    %1525 = vmatpush1.msra.mxu0 %v1483
    %1526 = vmatprep.subr.mxu0 0.0
    %1527 = vmatpush2.msra.mxu0 0.0
    %1528 = vmatprep.subr.mxu0 0.0
    %1529 = vmatpush2.msra.mxu0 0.0
    %1530 = vmatprep.subr.mxu0 0.0
    %1531 = vmatpush2.msra.mxu0 0.0
    %1532 = vmatprep.subr.mxu0 0.0
    %1533 = vmatpush2.msra.mxu0 0.0
    %1534 = vmatprep.subr.mxu0 0.0
    %1535 = vmatpush2.msra.mxu0 0.0
    %1536 = vmatprep.subr.mxu0 0.0
    %1537 = vmatpush2.msra.mxu0 0.0
    %1538 = vmatprep.subr.mxu0 0.0
    %1539 = vmatpush2.msra.mxu0 0.0
    %1540 = vmatprep.subr.mxu0 0.0
    %1541 = vmatpush2.msra.mxu0 0.0
    %1542 = vmatprep.subr.mxu0 0.0
    %1543 = vmatpush2.msra.mxu0 0.0
    %1544 = vmatprep.subr.mxu0 0.0
    %1545 = vmatpush2.msra.mxu0 0.0
    %1546 = vmatprep.subr.mxu0 0.0
    %1547 = vmatpush2.msra.mxu0 0.0
    %1548 = vmatprep.subr.mxu0 0.0
    %1549 = vmatpush2.msra.mxu0 0.0
    %1550 = vmatprep.subr.mxu0 0.0
    %1551 = vmatpush2.msra.mxu0 0.0
    %1552 = vmatprep.subr.mxu0 0.0
    %1553 = vmatpush2.msra.mxu0 0.0
    %1554 = vmatprep.subr.mxu0 0.0
    %1555 = vmatpush2.msra.mxu0 0.0
    %1556 = vmatprep.subr.mxu0 0.0
    %1557 = vmatpush2.msra.mxu0 0.0
    %1558 = vmatprep.mubr.f32.mxu0 0.0
    %1559 = vmatmul.mubr.f32.gmra.mxu0 %v1065
    %v1560 = vpop.f32.mrf.mxu0
    %v1561 = vadd.f32 %v1492, %v1560
    %v1562 = vpop.f32.mrf.mxu0
    %1563 = vdwg.mxu0
    %v1564 = vld [vmem:[%s549] sm:$0xff]
    %v1565 = vld [vmem:[%s549 + $0x8] sm:$0xff]
    %v1566 = vld [vmem:[%s549 + $0x10] sm:$0xff]
    %v1567 = vld [vmem:[%s549 + $0x18] sm:$0xff]
    %v1568 = vld [vmem:[%s554] sm:$0x1]
    %v1570 = vlaneseq
    %v1571 = vshrl.u32 %v1570, 7
    %v1572 = vsub.s32 0, %v1571
    %v1573 = vrot.slane %v1568, %v1572
    %1575 = vmatprep.subr.mxu0 0.0
    %1576 = vmatpush1.msra.mxu0 0.0
    %1577 = vmatprep.subr.mxu0 0.0
    %1578 = vmatpush1.msra.mxu0 0.0
    %1579 = vmatprep.subr.mxu0 0.0
    %1580 = vmatpush1.msra.mxu0 0.0
    %1581 = vmatprep.subr.mxu0 0.0
    %1582 = vmatpush1.msra.mxu0 0.0
    %1583 = vmatprep.subr.mxu0 0.0
    %1584 = vmatpush1.msra.mxu0 0.0
    %1585 = vmatprep.subr.mxu0 0.0
    %1586 = vmatpush1.msra.mxu0 0.0
    %1587 = vmatprep.subr.mxu0 0.0
    %1588 = vmatpush1.msra.mxu0 0.0
    %1589 = vmatprep.subr.mxu0 0.0
    %1590 = vmatpush1.msra.mxu0 0.0
    %1591 = vmatprep.subr.mxu0 0.0
    %1592 = vmatpush1.msra.mxu0 0.0
    %1593 = vmatprep.subr.mxu0 0.0
    %1594 = vmatpush1.msra.mxu0 0.0
    %1595 = vmatprep.subr.mxu0 0.0
    %1596 = vmatpush1.msra.mxu0 0.0
    %1597 = vmatprep.subr.mxu0 0.0
    %1598 = vmatpush1.msra.mxu0 0.0
    %1599 = vmatprep.subr.mxu0 0.0
    %1600 = vmatpush1.msra.mxu0 %v1567
    %1601 = vmatprep.subr.mxu0 0.0
    %1602 = vmatpush1.msra.mxu0 %v1566
    %1603 = vmatprep.subr.mxu0 0.0
    %1604 = vmatpush1.msra.mxu0 %v1565
    %1605 = vmatprep.subr.mxu0 0.0
    %1606 = vmatpush1.msra.mxu0 %v1564
    %1607 = vmatprep.subr.mxu0 0.0
    %1608 = vmatpush2.msra.mxu0 0.0
    %1609 = vmatprep.subr.mxu0 0.0
    %1610 = vmatpush2.msra.mxu0 0.0
    %1611 = vmatprep.subr.mxu0 0.0
    %1612 = vmatpush2.msra.mxu0 0.0
    %1613 = vmatprep.subr.mxu0 0.0
    %1614 = vmatpush2.msra.mxu0 0.0
    %1615 = vmatprep.subr.mxu0 0.0
    %1616 = vmatpush2.msra.mxu0 0.0
    %1617 = vmatprep.subr.mxu0 0.0
    %1618 = vmatpush2.msra.mxu0 0.0
    %1619 = vmatprep.subr.mxu0 0.0
    %1620 = vmatpush2.msra.mxu0 0.0
    %1621 = vmatprep.subr.mxu0 0.0
    %1622 = vmatpush2.msra.mxu0 0.0
    %1623 = vmatprep.subr.mxu0 0.0
    %1624 = vmatpush2.msra.mxu0 0.0
    %1625 = vmatprep.subr.mxu0 0.0
    %1626 = vmatpush2.msra.mxu0 0.0
    %1627 = vmatprep.subr.mxu0 0.0
    %1628 = vmatpush2.msra.mxu0 0.0
    %1629 = vmatprep.subr.mxu0 0.0
    %1630 = vmatpush2.msra.mxu0 0.0
    %1631 = vmatprep.subr.mxu0 0.0
    %1632 = vmatpush2.msra.mxu0 0.0
    %1633 = vmatprep.subr.mxu0 0.0
    %1634 = vmatpush2.msra.mxu0 0.0
    %1635 = vmatprep.subr.mxu0 0.0
    %1636 = vmatpush2.msra.mxu0 0.0
    %1637 = vmatprep.subr.mxu0 0.0
    %1638 = vmatpush2.msra.mxu0 0.0
    %1639 = vmatprep.mubr.f32.mxu0 0.0
    %1640 = vmatmul.mubr.f32.gmra.mxu0 %v1149
    %v1641 = vpop.f32.mrf.mxu0
    %v1642 = vadd.f32 %v1573, %v1641
    %v1643 = vpop.f32.mrf.mxu0
    %1644 = vmatprep.mubr.f32.mxu0 0.0
    %1645 = vmatmul.mubr.f32.gmra.mxu0 %v1152
    %v1646 = vpop.f32.mrf.mxu0
    %v1647 = vadd.f32 %v1573, %v1646
    %v1648 = vpop.f32.mrf.mxu0
    %1649 = vdwg.mxu0
    %v1650 = vld [vmem:[%s637] sm:$0xff]
    %v1651 = vld [vmem:[%s637 + $0x8] sm:$0xff]
    %v1652 = vld [vmem:[%s637 + $0x10] sm:$0xff]
    %v1653 = vld [vmem:[%s637 + $0x18] sm:$0xff]
    %v1654 = vld [vmem:[%s642] sm:$0x1]
    %v1656 = vlaneseq
    %v1657 = vshrl.u32 %v1656, 7
    %v1658 = vsub.s32 0, %v1657
    %v1659 = vrot.slane %v1654, %v1658
    %1661 = vmatprep.subr.mxu0 0.0
    %1662 = vmatpush1.msra.mxu0 0.0
    %1663 = vmatprep.subr.mxu0 0.0
    %1664 = vmatpush1.msra.mxu0 0.0
    %1665 = vmatprep.subr.mxu0 0.0
    %1666 = vmatpush1.msra.mxu0 0.0
    %1667 = vmatprep.subr.mxu0 0.0
    %1668 = vmatpush1.msra.mxu0 0.0
    %1669 = vmatprep.subr.mxu0 0.0
    %1670 = vmatpush1.msra.mxu0 0.0
    %1671 = vmatprep.subr.mxu0 0.0
    %1672 = vmatpush1.msra.mxu0 0.0
    %1673 = vmatprep.subr.mxu0 0.0
    %1674 = vmatpush1.msra.mxu0 0.0
    %1675 = vmatprep.subr.mxu0 0.0
    %1676 = vmatpush1.msra.mxu0 0.0
    %1677 = vmatprep.subr.mxu0 0.0
    %1678 = vmatpush1.msra.mxu0 0.0
    %1679 = vmatprep.subr.mxu0 0.0
    %1680 = vmatpush1.msra.mxu0 0.0
    %1681 = vmatprep.subr.mxu0 0.0
    %1682 = vmatpush1.msra.mxu0 0.0
    %1683 = vmatprep.subr.mxu0 0.0
    %1684 = vmatpush1.msra.mxu0 0.0
    %1685 = vmatprep.subr.mxu0 0.0
    %1686 = vmatpush1.msra.mxu0 %v1653
    %1687 = vmatprep.subr.mxu0 0.0
    %1688 = vmatpush1.msra.mxu0 %v1652
    %1689 = vmatprep.subr.mxu0 0.0
    %1690 = vmatpush1.msra.mxu0 %v1651
    %1691 = vmatprep.subr.mxu0 0.0
    %1692 = vmatpush1.msra.mxu0 %v1650
    %1693 = vmatprep.subr.mxu0 0.0
    %1694 = vmatpush2.msra.mxu0 0.0
    %1695 = vmatprep.subr.mxu0 0.0
    %1696 = vmatpush2.msra.mxu0 0.0
    %1697 = vmatprep.subr.mxu0 0.0
    %1698 = vmatpush2.msra.mxu0 0.0
    %1699 = vmatprep.subr.mxu0 0.0
    %1700 = vmatpush2.msra.mxu0 0.0
    %1701 = vmatprep.subr.mxu0 0.0
    %1702 = vmatpush2.msra.mxu0 0.0
    %1703 = vmatprep.subr.mxu0 0.0
    %1704 = vmatpush2.msra.mxu0 0.0
    %1705 = vmatprep.subr.mxu0 0.0
    %1706 = vmatpush2.msra.mxu0 0.0
    %1707 = vmatprep.subr.mxu0 0.0
    %1708 = vmatpush2.msra.mxu0 0.0
    %1709 = vmatprep.subr.mxu0 0.0
    %1710 = vmatpush2.msra.mxu0 0.0
    %1711 = vmatprep.subr.mxu0 0.0
    %1712 = vmatpush2.msra.mxu0 0.0
    %1713 = vmatprep.subr.mxu0 0.0
    %1714 = vmatpush2.msra.mxu0 0.0
    %1715 = vmatprep.subr.mxu0 0.0
    %1716 = vmatpush2.msra.mxu0 0.0
    %1717 = vmatprep.subr.mxu0 0.0
    %1718 = vmatpush2.msra.mxu0 0.0
    %1719 = vmatprep.subr.mxu0 0.0
    %1720 = vmatpush2.msra.mxu0 0.0
    %1721 = vmatprep.subr.mxu0 0.0
    %1722 = vmatpush2.msra.mxu0 0.0
    %1723 = vmatprep.subr.mxu0 0.0
    %1724 = vmatpush2.msra.mxu0 0.0
    %1725 = vmatprep.mubr.f32.mxu0 0.0
    %1726 = vmatmul.mubr.f32.gmra.mxu0 %v1149
    %v1727 = vpop.f32.mrf.mxu0
    %v1728 = vadd.f32 %v1659, %v1727
    %v1729 = vpop.f32.mrf.mxu0
    %1730 = vmatprep.mubr.f32.mxu0 0.0
    %1731 = vmatmul.mubr.f32.gmra.mxu0 %v1152
    %v1732 = vpop.f32.mrf.mxu0
    %v1733 = vadd.f32 %v1659, %v1732
    %v1734 = vpop.f32.mrf.mxu0
    %1735 = vdwg.mxu0
    %v1737 = vsel %vm298, %v1561, 0
    %v1740 = vsel %vm298, %v1642, 0
    %v1743 = vsel %vm298, %v1647, 0
    %1745 = vmatprep.subr.mxu0 0.0
    %1746 = vmatpush1.xpose.msra.mxu0 0.0
    %1747 = vmatprep.subr.mxu0 0.0
    %1748 = vmatpush1.xpose.msra.mxu0 0.0
    %1749 = vmatprep.subr.mxu0 0.0
    %1750 = vmatpush1.xpose.msra.mxu0 0.0
    %1751 = vmatprep.subr.mxu0 0.0
    %1752 = vmatpush1.xpose.msra.mxu0 0.0
    %1753 = vmatprep.subr.mxu0 0.0
    %1754 = vmatpush1.xpose.msra.mxu0 0.0
    %1755 = vmatprep.subr.mxu0 0.0
    %1756 = vmatpush1.xpose.msra.mxu0 0.0
    %1757 = vmatprep.subr.mxu0 0.0
    %1758 = vmatpush1.xpose.msra.mxu0 0.0
    %1759 = vmatprep.subr.mxu0 0.0
    %1760 = vmatpush1.xpose.msra.mxu0 0.0
    %1761 = vmatprep.subr.mxu0 0.0
    %1762 = vmatpush1.xpose.msra.mxu0 0.0
    %1763 = vmatprep.subr.mxu0 0.0
    %1764 = vmatpush1.xpose.msra.mxu0 0.0
    %1765 = vmatprep.subr.mxu0 0.0
    %1766 = vmatpush1.xpose.msra.mxu0 0.0
    %1767 = vmatprep.subr.mxu0 0.0
    %1768 = vmatpush1.xpose.msra.mxu0 0.0
    %1769 = vmatprep.subr.mxu0 0.0
    %1770 = vmatpush1.xpose.msra.mxu0 0.0
    %1771 = vmatprep.subr.mxu0 0.0
    %1772 = vmatpush1.xpose.msra.mxu0 0.0
    %1773 = vmatprep.subr.mxu0 0.0
    %1774 = vmatpush1.xpose.msra.mxu0 %v1743
    %1775 = vmatprep.subr.mxu0 0.0
    %1776 = vmatpush1.xpose.msra.mxu0 %v1740
    %1777 = vmatprep.subr.mxu0 0.0
    %1778 = vmatpush2.xpose.msra.mxu0 0.0
    %1779 = vmatprep.subr.mxu0 0.0
    %1780 = vmatpush2.xpose.msra.mxu0 0.0
    %1781 = vmatprep.subr.mxu0 0.0
    %1782 = vmatpush2.xpose.msra.mxu0 0.0
    %1783 = vmatprep.subr.mxu0 0.0
    %1784 = vmatpush2.xpose.msra.mxu0 0.0
    %1785 = vmatprep.subr.mxu0 0.0
    %1786 = vmatpush2.xpose.msra.mxu0 0.0
    %1787 = vmatprep.subr.mxu0 0.0
    %1788 = vmatpush2.xpose.msra.mxu0 0.0
    %1789 = vmatprep.subr.mxu0 0.0
    %1790 = vmatpush2.xpose.msra.mxu0 0.0
    %1791 = vmatprep.subr.mxu0 0.0
    %1792 = vmatpush2.xpose.msra.mxu0 0.0
    %1793 = vmatprep.subr.mxu0 0.0
    %1794 = vmatpush2.xpose.msra.mxu0 0.0
    %1795 = vmatprep.subr.mxu0 0.0
    %1796 = vmatpush2.xpose.msra.mxu0 0.0
    %1797 = vmatprep.subr.mxu0 0.0
    %1798 = vmatpush2.xpose.msra.mxu0 0.0
    %1799 = vmatprep.subr.mxu0 0.0
    %1800 = vmatpush2.xpose.msra.mxu0 0.0
    %1801 = vmatprep.subr.mxu0 0.0
    %1802 = vmatpush2.xpose.msra.mxu0 0.0
    %1803 = vmatprep.subr.mxu0 0.0
    %1804 = vmatpush2.xpose.msra.mxu0 0.0
    %1805 = vmatprep.subr.mxu0 0.0
    %1806 = vmatpush2.xpose.msra.mxu0 0.0
    %1807 = vmatprep.subr.mxu0 0.0
    %1808 = vmatpush2.xpose.msra.mxu0 0.0
    %1809 = vmatprep.mubr.f32.mxu0 0.0
    %1810 = vmatmul.mubr.f32.gmra.mxu0 %v1737
    %v1811 = vpop.f32.mrf.mxu0
    %v1812 = vadd.f32 0.0, %v1811
    %v1813 = vpop.f32.mrf.mxu0
    %1814 = vdwg.mxu0
    %v1815 = vmul.f32 %v1812, 0.25
    %v1816 = vsel %vm298, %v1815, -inf
    %1817 = vmax.xlane.f32.xlu0 %v1816
    %v1818 = vpop.xlane.xlu0 %1817
    %v1819 = vsub.f32 %v1815, %v1818
    %v1820 = vmul.f32 %v1819, 1.442695
    %v1821 = vpow.pop %v1820
    %v1822 = vsel %vm298, %v1821, 0.0
    %1823 = vadd.xlane.f32.xlu0 %v1822
    %v1824 = vpop.xlane.xlu0 %1823
    %v1825 = vrcp.pop %v1824
    %v1826 = vmul.f32 %v1821, %v1825
    %s1827 = scalar_lea.vmem [#allocation2], 24
    %1828 = vst.msk [vmem:[%s1827] sm:$0xff] %vm298, %v1826
    %v1830 = vsel %vm298, %v1826, 0
    %1832 = vmatprep.subr.mxu0 0.0
    %1833 = vmatpush1.msra.mxu0 0.0
    %1834 = vmatprep.subr.mxu0 0.0
    %1835 = vmatpush1.msra.mxu0 0.0
    %1836 = vmatprep.subr.mxu0 0.0
    %1837 = vmatpush1.msra.mxu0 0.0
    %1838 = vmatprep.subr.mxu0 0.0
    %1839 = vmatpush1.msra.mxu0 0.0
    %1840 = vmatprep.subr.mxu0 0.0
    %1841 = vmatpush1.msra.mxu0 0.0
    %1842 = vmatprep.subr.mxu0 0.0
    %1843 = vmatpush1.msra.mxu0 0.0
    %1844 = vmatprep.subr.mxu0 0.0
    %1845 = vmatpush1.msra.mxu0 0.0
    %1846 = vmatprep.subr.mxu0 0.0
    %1847 = vmatpush1.msra.mxu0 0.0
    %1848 = vmatprep.subr.mxu0 0.0
    %1849 = vmatpush1.msra.mxu0 0.0
    %1850 = vmatprep.subr.mxu0 0.0
    %1851 = vmatpush1.msra.mxu0 0.0
    %1852 = vmatprep.subr.mxu0 0.0
    %1853 = vmatpush1.msra.mxu0 0.0
    %1854 = vmatprep.subr.mxu0 0.0
    %1855 = vmatpush1.msra.mxu0 0.0
    %1856 = vmatprep.subr.mxu0 0.0
    %1857 = vmatpush1.msra.mxu0 0.0
    %1858 = vmatprep.subr.mxu0 0.0
    %1859 = vmatpush1.msra.mxu0 0.0
    %1860 = vmatprep.subr.mxu0 0.0
    %1861 = vmatpush1.msra.mxu0 %v1733
    %1862 = vmatprep.subr.mxu0 0.0
    %1863 = vmatpush1.msra.mxu0 %v1728
    %1864 = vmatprep.subr.mxu0 0.0
    %1865 = vmatpush2.msra.mxu0 0.0
    %1866 = vmatprep.subr.mxu0 0.0
    %1867 = vmatpush2.msra.mxu0 0.0
    %1868 = vmatprep.subr.mxu0 0.0
    %1869 = vmatpush2.msra.mxu0 0.0
    %1870 = vmatprep.subr.mxu0 0.0
    %1871 = vmatpush2.msra.mxu0 0.0
    %1872 = vmatprep.subr.mxu0 0.0
    %1873 = vmatpush2.msra.mxu0 0.0
    %1874 = vmatprep.subr.mxu0 0.0
    %1875 = vmatpush2.msra.mxu0 0.0
    %1876 = vmatprep.subr.mxu0 0.0
    %1877 = vmatpush2.msra.mxu0 0.0
    %1878 = vmatprep.subr.mxu0 0.0
    %1879 = vmatpush2.msra.mxu0 0.0
    %1880 = vmatprep.subr.mxu0 0.0
    %1881 = vmatpush2.msra.mxu0 0.0
    %1882 = vmatprep.subr.mxu0 0.0
    %1883 = vmatpush2.msra.mxu0 0.0
    %1884 = vmatprep.subr.mxu0 0.0
    %1885 = vmatpush2.msra.mxu0 0.0
    %1886 = vmatprep.subr.mxu0 0.0
    %1887 = vmatpush2.msra.mxu0 0.0
    %1888 = vmatprep.subr.mxu0 0.0
    %1889 = vmatpush2.msra.mxu0 0.0
    %1890 = vmatprep.subr.mxu0 0.0
    %1891 = vmatpush2.msra.mxu0 0.0
    %1892 = vmatprep.subr.mxu0 0.0
    %1893 = vmatpush2.msra.mxu0 0.0
    %1894 = vmatprep.subr.mxu0 0.0
    %1895 = vmatpush2.msra.mxu0 0.0
    %1896 = vmatprep.mubr.f32.mxu0 0.0
    %1897 = vmatmul.mubr.f32.gmra.mxu0 %v1830
    %v1898 = vpop.f32.mrf.mxu0
    %v1899 = vadd.f32 0.0, %v1898
    %v1900 = vpop.f32.mrf.mxu0
    %1901 = vdwg.mxu0
    %v1902 = vld [vmem:[%s891] sm:$0xff]
    %v1903 = vld [vmem:[%s891 + $0x8] sm:$0xff]
    %v1905 = vsel %vm298, %v1899, 0
    %1907 = vmatprep.subr.mxu0 0.0
    %1908 = vmatpush1.msra.mxu0 0.0
    %1909 = vmatprep.subr.mxu0 0.0
    %1910 = vmatpush1.msra.mxu0 0.0
    %1911 = vmatprep.subr.mxu0 0.0
    %1912 = vmatpush1.msra.mxu0 0.0
    %1913 = vmatprep.subr.mxu0 0.0
    %1914 = vmatpush1.msra.mxu0 0.0
    %1915 = vmatprep.subr.mxu0 0.0
    %1916 = vmatpush1.msra.mxu0 0.0
    %1917 = vmatprep.subr.mxu0 0.0
    %1918 = vmatpush1.msra.mxu0 0.0
    %1919 = vmatprep.subr.mxu0 0.0
    %1920 = vmatpush1.msra.mxu0 0.0
    %1921 = vmatprep.subr.mxu0 0.0
    %1922 = vmatpush1.msra.mxu0 0.0
    %1923 = vmatprep.subr.mxu0 0.0
    %1924 = vmatpush1.msra.mxu0 0.0
    %1925 = vmatprep.subr.mxu0 0.0
    %1926 = vmatpush1.msra.mxu0 0.0
    %1927 = vmatprep.subr.mxu0 0.0
    %1928 = vmatpush1.msra.mxu0 0.0
    %1929 = vmatprep.subr.mxu0 0.0
    %1930 = vmatpush1.msra.mxu0 0.0
    %1931 = vmatprep.subr.mxu0 0.0
    %1932 = vmatpush1.msra.mxu0 0.0
    %1933 = vmatprep.subr.mxu0 0.0
    %1934 = vmatpush1.msra.mxu0 0.0
    %1935 = vmatprep.subr.mxu0 0.0
    %1936 = vmatpush1.msra.mxu0 %v1903
    %1937 = vmatprep.subr.mxu0 0.0
    %1938 = vmatpush1.msra.mxu0 %v1902
    %1939 = vmatprep.subr.mxu0 0.0
    %1940 = vmatpush2.msra.mxu0 0.0
    %1941 = vmatprep.subr.mxu0 0.0
    %1942 = vmatpush2.msra.mxu0 0.0
    %1943 = vmatprep.subr.mxu0 0.0
    %1944 = vmatpush2.msra.mxu0 0.0
    %1945 = vmatprep.subr.mxu0 0.0
    %1946 = vmatpush2.msra.mxu0 0.0
    %1947 = vmatprep.subr.mxu0 0.0
    %1948 = vmatpush2.msra.mxu0 0.0
    %1949 = vmatprep.subr.mxu0 0.0
    %1950 = vmatpush2.msra.mxu0 0.0
    %1951 = vmatprep.subr.mxu0 0.0
    %1952 = vmatpush2.msra.mxu0 0.0
    %1953 = vmatprep.subr.mxu0 0.0
    %1954 = vmatpush2.msra.mxu0 0.0
    %1955 = vmatprep.subr.mxu0 0.0
    %1956 = vmatpush2.msra.mxu0 0.0
    %1957 = vmatprep.subr.mxu0 0.0
    %1958 = vmatpush2.msra.mxu0 0.0
    %1959 = vmatprep.subr.mxu0 0.0
    %1960 = vmatpush2.msra.mxu0 0.0
    %1961 = vmatprep.subr.mxu0 0.0
    %1962 = vmatpush2.msra.mxu0 0.0
    %1963 = vmatprep.subr.mxu0 0.0
    %1964 = vmatpush2.msra.mxu0 0.0
    %1965 = vmatprep.subr.mxu0 0.0
    %1966 = vmatpush2.msra.mxu0 0.0
    %1967 = vmatprep.subr.mxu0 0.0
    %1968 = vmatpush2.msra.mxu0 0.0
    %1969 = vmatprep.subr.mxu0 0.0
    %1970 = vmatpush2.msra.mxu0 0.0
    %1971 = vmatprep.mubr.f32.mxu0 0.0
    %1972 = vmatmul.mubr.f32.gmra.mxu0 %v1905
    %v1973 = vpop.f32.mrf.mxu0
    %v1974 = vadd.f32 0.0, %v1973
    %v1975 = vpop.f32.mrf.mxu0
    %1976 = vdwg.mxu0
    %v1978 = vsel %vm298, %v1478, 0
    %1980 = vmatprep.subr.mxu0 0.0
    %1981 = vmatpush1.msra.mxu0 0.0
    %1982 = vmatprep.subr.mxu0 0.0
    %1983 = vmatpush1.msra.mxu0 0.0
    %1984 = vmatprep.subr.mxu0 0.0
    %1985 = vmatpush1.msra.mxu0 0.0
    %1986 = vmatprep.subr.mxu0 0.0
    %1987 = vmatpush1.msra.mxu0 0.0
    %1988 = vmatprep.subr.mxu0 0.0
    %1989 = vmatpush1.msra.mxu0 0.0
    %1990 = vmatprep.subr.mxu0 0.0
    %1991 = vmatpush1.msra.mxu0 0.0
    %1992 = vmatprep.subr.mxu0 0.0
    %1993 = vmatpush1.msra.mxu0 0.0
    %1994 = vmatprep.subr.mxu0 0.0
    %1995 = vmatpush1.msra.mxu0 0.0
    %1996 = vmatprep.subr.mxu0 0.0
    %1997 = vmatpush1.msra.mxu0 0.0
    %1998 = vmatprep.subr.mxu0 0.0
    %1999 = vmatpush1.msra.mxu0 0.0
    %2000 = vmatprep.subr.mxu0 0.0
    %2001 = vmatpush1.msra.mxu0 0.0
    %2002 = vmatprep.subr.mxu0 0.0
    %2003 = vmatpush1.msra.mxu0 0.0
    %2004 = vmatprep.subr.mxu0 0.0
    %2005 = vmatpush1.msra.mxu0 0.0
    %2006 = vmatprep.subr.mxu0 0.0
    %2007 = vmatpush1.msra.mxu0 0.0
    %2008 = vmatprep.subr.mxu0 0.0
    %2009 = vmatpush1.msra.mxu0 %v1482
    %2010 = vmatprep.subr.mxu0 0.0
    %2011 = vmatpush1.msra.mxu0 %v1481
    %2012 = vmatprep.subr.mxu0 0.0
    %2013 = vmatpush2.msra.mxu0 0.0
    %2014 = vmatprep.subr.mxu0 0.0
    %2015 = vmatpush2.msra.mxu0 0.0
    %2016 = vmatprep.subr.mxu0 0.0
    %2017 = vmatpush2.msra.mxu0 0.0
    %2018 = vmatprep.subr.mxu0 0.0
    %2019 = vmatpush2.msra.mxu0 0.0
    %2020 = vmatprep.subr.mxu0 0.0
    %2021 = vmatpush2.msra.mxu0 0.0
    %2022 = vmatprep.subr.mxu0 0.0
    %2023 = vmatpush2.msra.mxu0 0.0
    %2024 = vmatprep.subr.mxu0 0.0
    %2025 = vmatpush2.msra.mxu0 0.0
    %2026 = vmatprep.subr.mxu0 0.0
    %2027 = vmatpush2.msra.mxu0 0.0
    %2028 = vmatprep.subr.mxu0 0.0
    %2029 = vmatpush2.msra.mxu0 0.0
    %2030 = vmatprep.subr.mxu0 0.0
    %2031 = vmatpush2.msra.mxu0 0.0
    %2032 = vmatprep.subr.mxu0 0.0
    %2033 = vmatpush2.msra.mxu0 0.0
    %2034 = vmatprep.subr.mxu0 0.0
    %2035 = vmatpush2.msra.mxu0 0.0
    %2036 = vmatprep.subr.mxu0 0.0
    %2037 = vmatpush2.msra.mxu0 0.0
    %2038 = vmatprep.subr.mxu0 0.0
    %2039 = vmatpush2.msra.mxu0 0.0
    %2040 = vmatprep.subr.mxu0 0.0
    %2041 = vmatpush2.msra.mxu0 0.0
    %2042 = vmatprep.subr.mxu0 0.0
    %2043 = vmatpush2.msra.mxu0 0.0
    %2044 = vmatprep.mubr.f32.mxu0 0.0
    %2045 = vmatmul.mubr.f32.gmra.mxu0 %v1978
    %v2046 = vpop.f32.mrf.mxu0
    %v2047 = vadd.f32 %v1974, %v2046
    %v2048 = vpop.f32.mrf.mxu0
    %2049 = vdwg.mxu0
    %v2050 = vadd.f32 %v2047, %v1044
    %s2051 = scalar_lea.vmem [#allocation4], 8
    %2052 = vst.msk [vmem:[%s2051] sm:$0xff] %vm42, %v2050
    // Predicated region
    $region26: #{tpu_custom_call.1} parent=1 // pred_check
      _
    $region27: #{tpu_custom_call.1} parent=1 // pred_check_branch
      %2054 = sbr.rel (0) target = $region29
    $region28: #{tpu_custom_call.1} parent=1 // pred_region
      %s2056 = ssub.s32 512, 512
      %2057 = vsyncadd [#allocation3], %s2056
      %s2058 = sshll.u32 [#allocation2], 4
      %s2059 = int_to_ptr.vmem [resolvable:$true] %s2058
      %2064 = dma.vmem_to_hbm [thread:$0]  %s2059, 512, %s6, [#allocation3], 128, 128, 8
    $region29: #{tpu_custom_call.1} parent=1 // pred_fallthru
      _
    // Predicated region
    $region30: #{tpu_custom_call.1} parent=1 // pred_check
      _
    $region31: #{tpu_custom_call.1} parent=1 // pred_check_branch
      %2066 = sbr.rel (0) target = $region33
    $region32: #{tpu_custom_call.1} parent=1 // pred_region
      %s2068 = ssub.s32 256, 256
      %2069 = vsyncadd [#allocation5], %s2068
      %s2070 = sshll.u32 [#allocation4], 4
      %s2071 = int_to_ptr.vmem [resolvable:$true] %s2070
      %2076 = dma.vmem_to_hbm [thread:$0]  %s2071, 256, %s7, [#allocation5], 128, 128, 8
    $region33: #{tpu_custom_call.1} parent=1 // pred_fallthru
      _
    // Predicated region
    $region34: #{tpu_custom_call.1} parent=1 // pred_check
      _
    $region35: #{tpu_custom_call.1} parent=1 // pred_check_branch
      %2078 = sbr.rel (0) target = $region37
    $region36: #{tpu_custom_call.1} parent=1 // pred_region
      %2079 = dma.done [#allocation3], 512
    $region37: #{tpu_custom_call.1} parent=1 // pred_fallthru
      _
    // Predicated region
    $region38: #{tpu_custom_call.1} parent=1 // pred_check
      _
    $region39: #{tpu_custom_call.1} parent=1 // pred_check_branch
      %2081 = sbr.rel (0) target = $region41
    $region40: #{tpu_custom_call.1} parent=1 // pred_region
      %2082 = dma.done [#allocation5], 256
    $region41: #{tpu_custom_call.1} parent=1 // pred_fallthru
      _
    %2083 = vsyncpa [#allocation3], 1
    %2084 = vsyncpa [#allocation5], 1

</llo_original>
